<compile_context>
chip_gen: v6e
topology: v6e:2x2x1
jax: 0.10.0
libtpu: 0.0.40
codegen_flags: <defaults>
</compile_context>

<pallas_src>
import functools
import math

import jax
import jax.numpy as jnp
import numpy as np
from jax.experimental import pallas as pl
from jax.experimental.pallas import tpu as pltpu


_ROW_ALIGN = 32                   # int8 native sublane packing is (32, 128)
_MAX_TILE_ROWS = 8192             # guard against degenerate tiny-L shapes
_BYTES_PER_ELEM = 12              # 4 B int8 pipeline bufs (2 in + 2 out) + ~8 B i32 temps
_TILE_VMEM_BUDGET = 24 << 20      # whole working set; < v7x 32 MiB scoped default
_VMEM_LIMIT_BYTES = 48 << 20      # explicit scoped limit (v7x physical = 64 MiB)
_PALLAS_MIN_ELEMENTS = 2 << 20    # below ~2M elems, plain jnp beats a pallas_call


def _round_up(x: int, m: int) -> int:
    return (x + m - 1) // m * m


def _subset_mask_kernel(mask_ref, out_ref, *, subset_rate: float, l_orig: int):
    """mask_ref/out_ref: (TB, Lp) int8; 1 == True (padded), 0 == False (valid).

    Lp may be a lane-padded (multiple-of-128) sequence length; padded columns
    are all 1, so Lp - sum(row) == l_orig - (# real padded) for real rows.
    Each block must cover the full (padded) sequence length.
    """
    m = mask_ref[...]                                               # (TB, Lp) int8
    tb, lp = m.shape
    # valid length per row; i32 accumulation without a materialized full upcast.
    padded = jnp.sum(m, axis=1, keepdims=True, dtype=jnp.int32)     # (TB, 1)
    valid = lp - padded                                             # == l_orig - real_padded
    # cutoff = min(ceil(valid * rate), L_orig - 1) in float32 (matches torch's
    # int-tensor * python-float promotion to f32).
    cutoff = jnp.minimum(
        jnp.ceil(valid.astype(jnp.float32) * subset_rate).astype(jnp.int32),
        l_orig - 1,
    )                                                               # (TB, 1)
    col = jax.lax.broadcasted_iota(jnp.int32, (tb, lp), dimension=1)
    # Single VPU select: keep prefix, force True from cutoff onwards.
    out_ref[...] = jnp.where(col >= cutoff, jnp.int8(1), m)


def _choose_tile_rows(B: int, Lp: int) -> int:
    """Largest reasonable row tile: VMEM-capped, int8-aligned."""
    max_rows_vmem = max(
        _ROW_ALIGN,
        (_TILE_VMEM_BUDGET // (_BYTES_PER_ELEM * max(Lp, 1))) // _ROW_ALIGN * _ROW_ALIGN,
    )
    tb = min(_MAX_TILE_ROWS, max_rows_vmem, _round_up(B, _ROW_ALIGN))
    # Prefer >= 4 grid steps (megacore sharding on 2-TC chips + DMA/compute
    # overlap) but only while each int8 block stays >= ~1 MiB; never shrink
    # small batches into the per-step-overhead regime (single-TC v5e/v6e).
    min_rows_1mib = max(_ROW_ALIGN, ((1 << 20) // max(Lp, 1)) // _ROW_ALIGN * _ROW_ALIGN)
    quarter = _round_up(pl.cdiv(B, 4), _ROW_ALIGN)
    if quarter >= min_rows_1mib:
        tb = min(tb, quarter)
    return max(tb, _ROW_ALIGN)


def _apply_subset_mask_pallas(mask_bool: jax.Array, subset_rate: float) -> jax.Array:
    B, L = mask_bool.shape
    Lp = _round_up(L, 128)
    # Lane-dense output only when the column padding is cheap (<= 25% extra).
    lane_pad = (L % 128 != 0) and ((Lp - L) * 4 <= L)
    if not lane_pad:
        Lp = L

    mask_i8 = mask_bool.astype(jnp.int8)           # 1 byte/elem boundary cast only
    if lane_pad:
        # Pad columns with True (1): valid = Lp - sum(row) stays exact.
        mask_i8 = jnp.pad(mask_i8, ((0, 0), (0, Lp - L)), constant_values=1)

    tb = _choose_tile_rows(B, Lp)
    grid = (pl.cdiv(B, tb),)                       # ragged edge handled by Pallas

    kernel = functools.partial(
        _subset_mask_kernel, subset_rate=float(subset_rate), l_orig=L)

    out_i8 = pl.pallas_call(
        kernel,
        out_shape=jax.ShapeDtypeStruct((B, Lp), jnp.int8),
        grid_spec=pltpu.PrefetchScalarGridSpec(
            num_scalar_prefetch=0,
            grid=grid,
            in_specs=[pl.BlockSpec((tb, Lp), lambda i: (i, 0))],
            out_specs=pl.BlockSpec((tb, Lp), lambda i: (i, 0)),
        ),
        compiler_params=pltpu.CompilerParams(
            dimension_semantics=("parallel",),
            vmem_limit_bytes=_VMEM_LIMIT_BYTES,
        ),
        cost_estimate=pl.CostEstimate(
            flops=2 * B * Lp, transcendentals=0, bytes_accessed=2 * B * Lp),
        input_output_aliases={0: 0},               # donate the int8 intermediate
    )(mask_i8)

    if lane_pad:
        out_i8 = out_i8[:, :L]
    return out_i8.astype(jnp.bool_)


def _apply_subset_mask_jnp(mask_bool: jax.Array, subset_rate: float) -> jax.Array:
    """Fused jnp path for small / extreme-L masks (same f32 semantics)."""
    B, L = mask_bool.shape
    valid = L - jnp.sum(mask_bool, axis=1, keepdims=True, dtype=jnp.int32)
    cutoff = jnp.minimum(
        jnp.ceil(valid.astype(jnp.float32) * subset_rate).astype(jnp.int32),
        L - 1,
    )
    col = jnp.arange(L, dtype=jnp.int32)[None, :]
    return mask_bool | (col >= cutoff)


def _apply_subset_mask(mask_bool: jax.Array, subset_rate: float) -> jax.Array:
    B, L = mask_bool.shape
    Lp = _round_up(L, 128)
    if B * L < _PALLAS_MIN_ELEMENTS:
        return _apply_subset_mask_jnp(mask_bool, subset_rate)
    if _ROW_ALIGN * Lp * _BYTES_PER_ELEM > _TILE_VMEM_BUDGET:
        # TODO(synk): extremely long rows (L ~ 100K+) need an in-kernel
        # chunked-L accumulation pass; fall back to the fused jnp path.
        return _apply_subset_mask_jnp(mask_bool, subset_rate)
    return _apply_subset_mask_pallas(mask_bool, subset_rate)


def subset_sampler(*tensors, subset_rate: float = 0.7):
    """JAX/Pallas equivalent of SubsetSampler(subset_rate).forward(*tensors)."""
    out = []
    for t in tensors:
        if t.dtype != jnp.bool_:
            out.append(t)              # non-bool tensors pass through unchanged
        else:
            out.append(_apply_subset_mask(t, subset_rate))
    return out


def _numpy_reference(mask: np.ndarray, subset_rate: float) -> np.ndarray:
    """Direct port of the PyTorch loop (float32 cutoff math, as in torch)."""
    out = mask.copy()
    B, L = mask.shape
    for i in range(B):
        length = int((~mask[i]).sum())
        cutoff = min(int(math.ceil(np.float32(length) * np.float32(subset_rate))), L - 1)
        out[i, cutoff:] = True
    return out


if __name__ == "__main__":
    key = jax.random.PRNGKey(0)
    k1, k2, k3, k4 = jax.random.split(key, 4)
    rate = 0.7

    # Non-bool tensor: passes through unchanged (NCHW floats).
    x = jax.random.normal(k1, (2, 4, 16, 16), dtype=jnp.float32)

    # Small boolean padding mask (B, L): the public API routes it through the
    # fused jnp path (below the pallas threshold).
    B1, L1 = 8, 128
    vl1 = jax.random.randint(k2, (B1,), minval=0, maxval=L1 + 1)
    m1 = jnp.arange(L1)[None, :] >= vl1[:, None]          # True = padded

    # Exercise the Pallas kernel directly at small shapes:
    #   m2: 128-aligned L (one lane-dense block, grid of 1, donated int8 i/o).
    #   m3: L = 1000 -> lane-padded to 1024 inside the boundary cast.
    B2, L2 = 512, 256
    vl2 = jax.random.randint(k3, (B2,), minval=0, maxval=L2 + 1)
    m2 = jnp.arange(L2)[None, :] >= vl2[:, None]

    B3, L3 = 64, 1000
    vl3 = jax.random.randint(k4, (B3,), minval=0, maxval=L3 + 1)
    m3 = jnp.arange(L3)[None, :] >= vl3[:, None]

    out_x, out_m1 = subset_sampler(x, m1, subset_rate=rate)
    out_m2 = _apply_subset_mask_pallas(m2, rate)
    out_m3 = _apply_subset_mask_pallas(m3, rate)
    jax.block_until_ready(out_x)
    jax.block_until_ready(out_m1)
    jax.block_until_ready(out_m2)
    jax.block_until_ready(out_m3)

    # Verify against a direct port of the PyTorch reference loop.
    assert np.array_equal(np.asarray(out_x), np.asarray(x)), "passthrough mismatch"
    assert np.array_equal(
        np.asarray(out_m1), _numpy_reference(np.asarray(m1), rate)
    ), "small-mask (jnp path) mismatch vs reference"
    assert np.array_equal(
        np.asarray(out_m2), _numpy_reference(np.asarray(m2), rate)
    ), "pallas path (aligned L) mismatch vs reference"
    assert np.array_equal(
        np.asarray(out_m3), _numpy_reference(np.asarray(m3), rate)
    ), "pallas path (lane-padded L) mismatch vs reference"

    print("KERNEL_OK")
</pallas_src>

<mosaic_0001>
module attributes {stable_mosaic.version = 11 : i64} {
  func.func @_subset_mask_kernel(%arg0: i32, %arg1: memref<512x256xi8, #tpu.memory_space<vmem>>, %arg2: memref<512x256xi8, #tpu.memory_space<vmem>>) attributes {dimension_semantics = [#tpu.dimension_semantics<parallel>], iteration_bounds = array<i64: 1>, scalar_prefetch = 0 : i64, scratch_operands = 0 : i64, tpu.core_type = #tpu.core_type<tc>, window_params = [{transform_indices = @transform_0, window_bounds = array<i64: 512, 256>}, {transform_indices = @transform_1, window_bounds = array<i64: 512, 256>}]} {
    %c0 = arith.constant 0 : index
    %c0_0 = arith.constant 0 : index
    %0 = vector.load %arg1[%c0, %c0_0] : memref<512x256xi8, #tpu.memory_space<vmem>>, vector<512x256xi8>
    %1 = arith.extsi %0 : vector<512x256xi8> to vector<512x256xi32>
    %cst = arith.constant dense<0> : vector<512xi32>
    %2 = vector.multi_reduction <add>, %1, %cst [1] : vector<512x256xi32> to vector<512xi32>
    %3 = vector.shape_cast %2 : vector<512xi32> to vector<512x1xi32>
    %c256_i32 = arith.constant 256 : i32
    %4 = vector.broadcast %c256_i32 : i32 to vector<512x1xi32>
    %5 = arith.subi %4, %3 : vector<512x1xi32>
    %6 = arith.sitofp %5 : vector<512x1xi32> to vector<512x1xf32>
    %cst_1 = arith.constant 0.699999988 : f32
    %7 = vector.broadcast %cst_1 : f32 to vector<512x1xf32>
    %8 = arith.mulf %6, %7 : vector<512x1xf32>
    %9 = math.ceil %8 : vector<512x1xf32>
    %10 = arith.fptosi %9 : vector<512x1xf32> to vector<512x1xi32>
    %c255_i32 = arith.constant 255 : i32
    %11 = vector.broadcast %c255_i32 : i32 to vector<512x1xi32>
    %12 = arith.minsi %10, %11 : vector<512x1xi32>
    %13 = tpu.iota {dimensions = array<i32: 1>} : vector<512x256xi32>
    %14 = vector.broadcast %12 : vector<512x1xi32> to vector<512x256xi32>
    %15 = arith.cmpi sge, %13, %14 : vector<512x256xi32>
    %c1_i8 = arith.constant 1 : i8
    %16 = vector.broadcast %c1_i8 : i8 to vector<512x256xi8>
    %17 = arith.select %15, %16, %0 : vector<512x256xi1>, vector<512x256xi8>
    %c0_2 = arith.constant 0 : index
    %c0_3 = arith.constant 0 : index
    %18 = vector.load %arg2[%c0_2, %c0_3] : memref<512x256xi8, #tpu.memory_space<vmem>>, vector<512x256xi8>
    tpu.vector_store %arg2[%c0_2, %c0_3], %17 {strides = array<i32>} : memref<512x256xi8, #tpu.memory_space<vmem>>, vector<512x256xi8>,
    return
  }
  func.func @transform_0(%arg0: i32) -> (i32, i32) {
    %c0_i32 = arith.constant 0 : i32
    %c0_i32_0 = arith.constant 0 : i32
    return %arg0, %c0_i32 : i32, i32
  }
  func.func @transform_1(%arg0: i32) -> (i32, i32) {
    %c0_i32 = arith.constant 0 : i32
    %c0_i32_0 = arith.constant 0 : i32
    return %arg0, %c0_i32 : i32, i32
  }
}

</mosaic_0001>

<llo_original>
// kernel: tpu_custom_call.1
$region0: #{tpu_custom_call.1}
  #allocation0 [shape = 'u32[]', space=smem, size = 0x4, offset = 0x4, fixed_abs, tag = 'smem constant byte address 0x4 - core index']
  #allocation1 [shape = 'u32[144,128]{1,0:T(1,128)}', space=vmem, size = 0x12000, scoped, tag = 'internal scratch']
  %s0 = inlined_call_operand.hbm [shape: s8[512,256], index: 0, kind: input, shape index: {}, may-alias: {0,1}]
  %s1 = inlined_call_operand.hbm [shape: s8[512,256], index: 1, kind: output, shape index: {}, may-alias: {0,1}]
  %s2 = sld [smem:[#allocation0]]
  $region18: #{tpu_custom_call.1} parent=0
    _
  %s4 = ssub.s32 1, %s2
  %s5 = scalar_select 0, %s4, %s2
  $region1: #{tpu_custom_call.1} parent=0
    #allocation2 [shape = 'u8[131072]{0}', space=vmem, size = 0x20000, scoped, tag = 'input window, operand 0, single buffered']
    #allocation3 [shape = 's32[1]{0}', space=sflag, size = 0x4, scoped, tag = 'scoped memory for tpu_custom_call.1']
    #allocation4 [shape = 's32[1]{0}', space=sflag, size = 0x4, scoped, tag = 'scoped memory for tpu_custom_call.1']
    #allocation5 [shape = 'u8[131072]{0}', space=vmem, size = 0x20000, scoped, tag = 'output window, operand 0, single buffered']
    %6 = vsyncpa [#allocation3], 0
    %7 = vsyncpa [#allocation4], 0
    // Predicated region
    $region2: #{tpu_custom_call.1} parent=1 // pred_check
      _
    $region3: #{tpu_custom_call.1} parent=1 // pred_check_branch
      %9 = sbr.rel (0) target = $region5
    $region4: #{tpu_custom_call.1} parent=1 // pred_region
      %s11 = ssub.s32 4096, 4096
      %12 = vsyncadd [#allocation3], %s11
      %s13 = sshll.u32 [#allocation2], 4
      %s14 = int_to_ptr.vmem [resolvable:$true] %s13
      %19 = dma.hbm_to_vmem [thread:$0]  %s0, 4096, %s14, [#allocation3], 256, 256, 16
    $region5: #{tpu_custom_call.1} parent=1 // pred_fallthru
      _
    // Predicated region
    $region6: #{tpu_custom_call.1} parent=1 // pred_check
      _
    $region7: #{tpu_custom_call.1} parent=1 // pred_check_branch
      %21 = sbr.rel (0) target = $region9
    $region8: #{tpu_custom_call.1} parent=1 // pred_region
      %22 = dma.done [#allocation3], 4096
    $region9: #{tpu_custom_call.1} parent=1 // pred_fallthru
      _
    %v24 = vld [vmem:[#allocation2] sm:$0xff]
    %v25 = vld [vmem:[#allocation2 + $0x8] sm:$0xff]
    %v26 = vld [vmem:[#allocation2 + $0x10] sm:$0xff]
    %v27 = vld [vmem:[#allocation2 + $0x18] sm:$0xff]
    %v28 = vld [vmem:[#allocation2 + $0x20] sm:$0xff]
    %v29 = vld [vmem:[#allocation2 + $0x28] sm:$0xff]
    %v30 = vld [vmem:[#allocation2 + $0x30] sm:$0xff]
    %v31 = vld [vmem:[#allocation2 + $0x38] sm:$0xff]
    %v32 = vld [vmem:[#allocation2 + $0x40] sm:$0xff]
    %v33 = vld [vmem:[#allocation2 + $0x48] sm:$0xff]
    %v34 = vld [vmem:[#allocation2 + $0x50] sm:$0xff]
    %v35 = vld [vmem:[#allocation2 + $0x58] sm:$0xff]
    %v36 = vld [vmem:[#allocation2 + $0x60] sm:$0xff]
    %v37 = vld [vmem:[#allocation2 + $0x68] sm:$0xff]
    %v38 = vld [vmem:[#allocation2 + $0x70] sm:$0xff]
    %v39 = vld [vmem:[#allocation2 + $0x78] sm:$0xff]
    %v40 = vld [vmem:[#allocation2 + $0x80] sm:$0xff]
    %v41 = vld [vmem:[#allocation2 + $0x88] sm:$0xff]
    %v42 = vld [vmem:[#allocation2 + $0x90] sm:$0xff]
    %v43 = vld [vmem:[#allocation2 + $0x98] sm:$0xff]
    %v44 = vld [vmem:[#allocation2 + $0xa0] sm:$0xff]
    %v45 = vld [vmem:[#allocation2 + $0xa8] sm:$0xff]
    %v46 = vld [vmem:[#allocation2 + $0xb0] sm:$0xff]
    %v47 = vld [vmem:[#allocation2 + $0xb8] sm:$0xff]
    %v48 = vld [vmem:[#allocation2 + $0xc0] sm:$0xff]
    %v49 = vld [vmem:[#allocation2 + $0xc8] sm:$0xff]
    %v50 = vld [vmem:[#allocation2 + $0xd0] sm:$0xff]
    %v51 = vld [vmem:[#allocation2 + $0xd8] sm:$0xff]
    %v52 = vld [vmem:[#allocation2 + $0xe0] sm:$0xff]
    %v53 = vld [vmem:[#allocation2 + $0xe8] sm:$0xff]
    %v54 = vld [vmem:[#allocation2 + $0xf0] sm:$0xff]
    %v55 = vld [vmem:[#allocation2 + $0xf8] sm:$0xff]
    %v56 = vunpack.c.0.s8 %v24
    %v57 = vunpack.c.0.s8 %v25
    %v58 = vunpack.c.1.s8 %v24
    %v59 = vunpack.c.1.s8 %v25
    %v60 = vunpack.c.2.s8 %v24
    %v61 = vunpack.c.2.s8 %v25
    %v62 = vunpack.c.3.s8 %v24
    %v63 = vunpack.c.3.s8 %v25
    %v64 = vunpack.c.0.s8 %v26
    %v65 = vunpack.c.0.s8 %v27
    %v66 = vunpack.c.1.s8 %v26
    %v67 = vunpack.c.1.s8 %v27
    %v68 = vunpack.c.2.s8 %v26
    %v69 = vunpack.c.2.s8 %v27
    %v70 = vunpack.c.3.s8 %v26
    %v71 = vunpack.c.3.s8 %v27
    %v72 = vunpack.c.0.s8 %v28
    %v73 = vunpack.c.0.s8 %v29
    %v74 = vunpack.c.1.s8 %v28
    %v75 = vunpack.c.1.s8 %v29
    %v76 = vunpack.c.2.s8 %v28
    %v77 = vunpack.c.2.s8 %v29
    %v78 = vunpack.c.3.s8 %v28
    %v79 = vunpack.c.3.s8 %v29
    %v80 = vunpack.c.0.s8 %v30
    %v81 = vunpack.c.0.s8 %v31
    %v82 = vunpack.c.1.s8 %v30
    %v83 = vunpack.c.1.s8 %v31
    %v84 = vunpack.c.2.s8 %v30
    %v85 = vunpack.c.2.s8 %v31
    %v86 = vunpack.c.3.s8 %v30
    %v87 = vunpack.c.3.s8 %v31
    %v88 = vunpack.c.0.s8 %v32
    %v89 = vunpack.c.0.s8 %v33
    %v90 = vunpack.c.1.s8 %v32
    %v91 = vunpack.c.1.s8 %v33
    %v92 = vunpack.c.2.s8 %v32
    %v93 = vunpack.c.2.s8 %v33
    %v94 = vunpack.c.3.s8 %v32
    %v95 = vunpack.c.3.s8 %v33
    %v96 = vunpack.c.0.s8 %v34
    %v97 = vunpack.c.0.s8 %v35
    %v98 = vunpack.c.1.s8 %v34
    %v99 = vunpack.c.1.s8 %v35
    %v100 = vunpack.c.2.s8 %v34
    %v101 = vunpack.c.2.s8 %v35
    %v102 = vunpack.c.3.s8 %v34
    %v103 = vunpack.c.3.s8 %v35
    %v104 = vunpack.c.0.s8 %v36
    %v105 = vunpack.c.0.s8 %v37
    %v106 = vunpack.c.1.s8 %v36
    %v107 = vunpack.c.1.s8 %v37
    %v108 = vunpack.c.2.s8 %v36
    %v109 = vunpack.c.2.s8 %v37
    %v110 = vunpack.c.3.s8 %v36
    %v111 = vunpack.c.3.s8 %v37
    %v112 = vunpack.c.0.s8 %v38
    %v113 = vunpack.c.0.s8 %v39
    %v114 = vunpack.c.1.s8 %v38
    %v115 = vunpack.c.1.s8 %v39
    %v116 = vunpack.c.2.s8 %v38
    %v117 = vunpack.c.2.s8 %v39
    %v118 = vunpack.c.3.s8 %v38
    %v119 = vunpack.c.3.s8 %v39
    %v120 = vunpack.c.0.s8 %v40
    %v121 = vunpack.c.0.s8 %v41
    %v122 = vunpack.c.1.s8 %v40
    %v123 = vunpack.c.1.s8 %v41
    %v124 = vunpack.c.2.s8 %v40
    %v125 = vunpack.c.2.s8 %v41
    %v126 = vunpack.c.3.s8 %v40
    %v127 = vunpack.c.3.s8 %v41
    %v128 = vunpack.c.0.s8 %v42
    %v129 = vunpack.c.0.s8 %v43
    %v130 = vunpack.c.1.s8 %v42
    %v131 = vunpack.c.1.s8 %v43
    %v132 = vunpack.c.2.s8 %v42
    %v133 = vunpack.c.2.s8 %v43
    %v134 = vunpack.c.3.s8 %v42
    %v135 = vunpack.c.3.s8 %v43
    %v136 = vunpack.c.0.s8 %v44
    %v137 = vunpack.c.0.s8 %v45
    %v138 = vunpack.c.1.s8 %v44
    %v139 = vunpack.c.1.s8 %v45
    %v140 = vunpack.c.2.s8 %v44
    %v141 = vunpack.c.2.s8 %v45
    %v142 = vunpack.c.3.s8 %v44
    %v143 = vunpack.c.3.s8 %v45
    %v144 = vunpack.c.0.s8 %v46
    %v145 = vunpack.c.0.s8 %v47
    %v146 = vunpack.c.1.s8 %v46
    %v147 = vunpack.c.1.s8 %v47
    %v148 = vunpack.c.2.s8 %v46
    %v149 = vunpack.c.2.s8 %v47
    %v150 = vunpack.c.3.s8 %v46
    %v151 = vunpack.c.3.s8 %v47
    %v152 = vunpack.c.0.s8 %v48
    %v153 = vunpack.c.0.s8 %v49
    %v154 = vunpack.c.1.s8 %v48
    %v155 = vunpack.c.1.s8 %v49
    %v156 = vunpack.c.2.s8 %v48
    %v157 = vunpack.c.2.s8 %v49
    %v158 = vunpack.c.3.s8 %v48
    %v159 = vunpack.c.3.s8 %v49
    %v160 = vunpack.c.0.s8 %v50
    %v161 = vunpack.c.0.s8 %v51
    %v162 = vunpack.c.1.s8 %v50
    %v163 = vunpack.c.1.s8 %v51
    %v164 = vunpack.c.2.s8 %v50
    %v165 = vunpack.c.2.s8 %v51
    %v166 = vunpack.c.3.s8 %v50
    %v167 = vunpack.c.3.s8 %v51
    %v168 = vunpack.c.0.s8 %v52
    %v169 = vunpack.c.0.s8 %v53
    %v170 = vunpack.c.1.s8 %v52
    %v171 = vunpack.c.1.s8 %v53
    %v172 = vunpack.c.2.s8 %v52
    %v173 = vunpack.c.2.s8 %v53
    %v174 = vunpack.c.3.s8 %v52
    %v175 = vunpack.c.3.s8 %v53
    %v176 = vunpack.c.0.s8 %v54
    %v177 = vunpack.c.0.s8 %v55
    %v178 = vunpack.c.1.s8 %v54
    %v179 = vunpack.c.1.s8 %v55
    %v180 = vunpack.c.2.s8 %v54
    %v181 = vunpack.c.2.s8 %v55
    %v182 = vunpack.c.3.s8 %v54
    %v183 = vunpack.c.3.s8 %v55
    %v184 = vadd.s32 %v56, %v57
    %v185 = vand.u32 %v184, 65535
    %v186 = vshrl.u32 %v184, 16
    %v187 = vcvt.s32.f32 %v185
    %v188 = vcvt.s32.f32 %v186
    %189 = vadd.xlane.f32.xlu0 %v187
    %v190 = vpop.xlane.xlu0 %189
    %191 = vadd.xlane.f32.xlu0 %v188
    %v192 = vpop.xlane.xlu0 %191
    %v193 = vcvt.f32.s32 %v190
    %v194 = vcvt.f32.s32 %v192
    %v195 = vshll.u32 %v194, 16
    %v196 = vadd.s32 %v195, %v193
    %v197 = vadd.s32 %v58, %v59
    %v198 = vand.u32 %v197, 65535
    %v199 = vshrl.u32 %v197, 16
    %v200 = vcvt.s32.f32 %v198
    %v201 = vcvt.s32.f32 %v199
    %202 = vadd.xlane.f32.xlu0 %v200
    %v203 = vpop.xlane.xlu0 %202
    %204 = vadd.xlane.f32.xlu0 %v201
    %v205 = vpop.xlane.xlu0 %204
    %v206 = vcvt.f32.s32 %v203
    %v207 = vcvt.f32.s32 %v205
    %v208 = vshll.u32 %v207, 16
    %v209 = vadd.s32 %v208, %v206
    %v210 = vadd.s32 %v60, %v61
    %v211 = vand.u32 %v210, 65535
    %v212 = vshrl.u32 %v210, 16
    %v213 = vcvt.s32.f32 %v211
    %v214 = vcvt.s32.f32 %v212
    %215 = vadd.xlane.f32.xlu0 %v213
    %v216 = vpop.xlane.xlu0 %215
    %217 = vadd.xlane.f32.xlu0 %v214
    %v218 = vpop.xlane.xlu0 %217
    %v219 = vcvt.f32.s32 %v216
    %v220 = vcvt.f32.s32 %v218
    %v221 = vshll.u32 %v220, 16
    %v222 = vadd.s32 %v221, %v219
    %v223 = vadd.s32 %v62, %v63
    %v224 = vand.u32 %v223, 65535
    %v225 = vshrl.u32 %v223, 16
    %v226 = vcvt.s32.f32 %v224
    %v227 = vcvt.s32.f32 %v225
    %228 = vadd.xlane.f32.xlu0 %v226
    %v229 = vpop.xlane.xlu0 %228
    %230 = vadd.xlane.f32.xlu0 %v227
    %v231 = vpop.xlane.xlu0 %230
    %v232 = vcvt.f32.s32 %v229
    %v233 = vcvt.f32.s32 %v231
    %v234 = vshll.u32 %v233, 16
    %v235 = vadd.s32 %v234, %v232
    %v236 = vadd.s32 %v64, %v65
    %v237 = vand.u32 %v236, 65535
    %v238 = vshrl.u32 %v236, 16
    %v239 = vcvt.s32.f32 %v237
    %v240 = vcvt.s32.f32 %v238
    %241 = vadd.xlane.f32.xlu0 %v239
    %v242 = vpop.xlane.xlu0 %241
    %243 = vadd.xlane.f32.xlu0 %v240
    %v244 = vpop.xlane.xlu0 %243
    %v245 = vcvt.f32.s32 %v242
    %v246 = vcvt.f32.s32 %v244
    %v247 = vshll.u32 %v246, 16
    %v248 = vadd.s32 %v247, %v245
    %v249 = vadd.s32 %v66, %v67
    %v250 = vand.u32 %v249, 65535
    %v251 = vshrl.u32 %v249, 16
    %v252 = vcvt.s32.f32 %v250
    %v253 = vcvt.s32.f32 %v251
    %254 = vadd.xlane.f32.xlu0 %v252
    %v255 = vpop.xlane.xlu0 %254
    %256 = vadd.xlane.f32.xlu0 %v253
    %v257 = vpop.xlane.xlu0 %256
    %v258 = vcvt.f32.s32 %v255
    %v259 = vcvt.f32.s32 %v257
    %v260 = vshll.u32 %v259, 16
    %v261 = vadd.s32 %v260, %v258
    %v262 = vadd.s32 %v68, %v69
    %v263 = vand.u32 %v262, 65535
    %v264 = vshrl.u32 %v262, 16
    %v265 = vcvt.s32.f32 %v263
    %v266 = vcvt.s32.f32 %v264
    %267 = vadd.xlane.f32.xlu0 %v265
    %v268 = vpop.xlane.xlu0 %267
    %269 = vadd.xlane.f32.xlu0 %v266
    %v270 = vpop.xlane.xlu0 %269
    %v271 = vcvt.f32.s32 %v268
    %v272 = vcvt.f32.s32 %v270
    %v273 = vshll.u32 %v272, 16
    %v274 = vadd.s32 %v273, %v271
    %v275 = vadd.s32 %v70, %v71
    %v276 = vand.u32 %v275, 65535
    %v277 = vshrl.u32 %v275, 16
    %v278 = vcvt.s32.f32 %v276
    %v279 = vcvt.s32.f32 %v277
    %280 = vadd.xlane.f32.xlu0 %v278
    %v281 = vpop.xlane.xlu0 %280
    %282 = vadd.xlane.f32.xlu0 %v279
    %v283 = vpop.xlane.xlu0 %282
    %v284 = vcvt.f32.s32 %v281
    %v285 = vcvt.f32.s32 %v283
    %v286 = vshll.u32 %v285, 16
    %v287 = vadd.s32 %v286, %v284
    %v288 = vadd.s32 %v72, %v73
    %v289 = vand.u32 %v288, 65535
    %v290 = vshrl.u32 %v288, 16
    %v291 = vcvt.s32.f32 %v289
    %v292 = vcvt.s32.f32 %v290
    %293 = vadd.xlane.f32.xlu0 %v291
    %v294 = vpop.xlane.xlu0 %293
    %295 = vadd.xlane.f32.xlu0 %v292
    %v296 = vpop.xlane.xlu0 %295
    %v297 = vcvt.f32.s32 %v294
    %v298 = vcvt.f32.s32 %v296
    %v299 = vshll.u32 %v298, 16
    %v300 = vadd.s32 %v299, %v297
    %v301 = vadd.s32 %v74, %v75
    %v302 = vand.u32 %v301, 65535
    %v303 = vshrl.u32 %v301, 16
    %v304 = vcvt.s32.f32 %v302
    %v305 = vcvt.s32.f32 %v303
    %306 = vadd.xlane.f32.xlu0 %v304
    %v307 = vpop.xlane.xlu0 %306
    %308 = vadd.xlane.f32.xlu0 %v305
    %v309 = vpop.xlane.xlu0 %308
    %v310 = vcvt.f32.s32 %v307
    %v311 = vcvt.f32.s32 %v309
    %v312 = vshll.u32 %v311, 16
    %v313 = vadd.s32 %v312, %v310
    %v314 = vadd.s32 %v76, %v77
    %v315 = vand.u32 %v314, 65535
    %v316 = vshrl.u32 %v314, 16
    %v317 = vcvt.s32.f32 %v315
    %v318 = vcvt.s32.f32 %v316
    %319 = vadd.xlane.f32.xlu0 %v317
    %v320 = vpop.xlane.xlu0 %319
    %321 = vadd.xlane.f32.xlu0 %v318
    %v322 = vpop.xlane.xlu0 %321
    %v323 = vcvt.f32.s32 %v320
    %v324 = vcvt.f32.s32 %v322
    %v325 = vshll.u32 %v324, 16
    %v326 = vadd.s32 %v325, %v323
    %v327 = vadd.s32 %v78, %v79
    %v328 = vand.u32 %v327, 65535
    %v329 = vshrl.u32 %v327, 16
    %v330 = vcvt.s32.f32 %v328
    %v331 = vcvt.s32.f32 %v329
    %332 = vadd.xlane.f32.xlu0 %v330
    %v333 = vpop.xlane.xlu0 %332
    %334 = vadd.xlane.f32.xlu0 %v331
    %v335 = vpop.xlane.xlu0 %334
    %v336 = vcvt.f32.s32 %v333
    %v337 = vcvt.f32.s32 %v335
    %v338 = vshll.u32 %v337, 16
    %v339 = vadd.s32 %v338, %v336
    %v340 = vadd.s32 %v80, %v81
    %v341 = vand.u32 %v340, 65535
    %v342 = vshrl.u32 %v340, 16
    %v343 = vcvt.s32.f32 %v341
    %v344 = vcvt.s32.f32 %v342
    %345 = vadd.xlane.f32.xlu0 %v343
    %v346 = vpop.xlane.xlu0 %345
    %347 = vadd.xlane.f32.xlu0 %v344
    %v348 = vpop.xlane.xlu0 %347
    %v349 = vcvt.f32.s32 %v346
    %v350 = vcvt.f32.s32 %v348
    %v351 = vshll.u32 %v350, 16
    %v352 = vadd.s32 %v351, %v349
    %v353 = vadd.s32 %v82, %v83
    %v354 = vand.u32 %v353, 65535
    %v355 = vshrl.u32 %v353, 16
    %v356 = vcvt.s32.f32 %v354
    %v357 = vcvt.s32.f32 %v355
    %358 = vadd.xlane.f32.xlu0 %v356
    %v359 = vpop.xlane.xlu0 %358
    %360 = vadd.xlane.f32.xlu0 %v357
    %v361 = vpop.xlane.xlu0 %360
    %v362 = vcvt.f32.s32 %v359
    %v363 = vcvt.f32.s32 %v361
    %v364 = vshll.u32 %v363, 16
    %v365 = vadd.s32 %v364, %v362
    %v366 = vadd.s32 %v84, %v85
    %v367 = vand.u32 %v366, 65535
    %v368 = vshrl.u32 %v366, 16
    %v369 = vcvt.s32.f32 %v367
    %v370 = vcvt.s32.f32 %v368
    %371 = vadd.xlane.f32.xlu0 %v369
    %v372 = vpop.xlane.xlu0 %371
    %373 = vadd.xlane.f32.xlu0 %v370
    %v374 = vpop.xlane.xlu0 %373
    %v375 = vcvt.f32.s32 %v372
    %v376 = vcvt.f32.s32 %v374
    %v377 = vshll.u32 %v376, 16
    %v378 = vadd.s32 %v377, %v375
    %v379 = vadd.s32 %v86, %v87
    %v380 = vand.u32 %v379, 65535
    %v381 = vshrl.u32 %v379, 16
    %v382 = vcvt.s32.f32 %v380
    %v383 = vcvt.s32.f32 %v381
    %384 = vadd.xlane.f32.xlu0 %v382
    %v385 = vpop.xlane.xlu0 %384
    %386 = vadd.xlane.f32.xlu0 %v383
    %v387 = vpop.xlane.xlu0 %386
    %v388 = vcvt.f32.s32 %v385
    %v389 = vcvt.f32.s32 %v387
    %v390 = vshll.u32 %v389, 16
    %v391 = vadd.s32 %v390, %v388
    %v392 = vadd.s32 %v88, %v89
    %v393 = vand.u32 %v392, 65535
    %v394 = vshrl.u32 %v392, 16
    %v395 = vcvt.s32.f32 %v393
    %v396 = vcvt.s32.f32 %v394
    %397 = vadd.xlane.f32.xlu0 %v395
    %v398 = vpop.xlane.xlu0 %397
    %399 = vadd.xlane.f32.xlu0 %v396
    %v400 = vpop.xlane.xlu0 %399
    %v401 = vcvt.f32.s32 %v398
    %v402 = vcvt.f32.s32 %v400
    %v403 = vshll.u32 %v402, 16
    %v404 = vadd.s32 %v403, %v401
    %v405 = vadd.s32 %v90, %v91
    %v406 = vand.u32 %v405, 65535
    %v407 = vshrl.u32 %v405, 16
    %v408 = vcvt.s32.f32 %v406
    %v409 = vcvt.s32.f32 %v407
    %410 = vadd.xlane.f32.xlu0 %v408
    %v411 = vpop.xlane.xlu0 %410
    %412 = vadd.xlane.f32.xlu0 %v409
    %v413 = vpop.xlane.xlu0 %412
    %v414 = vcvt.f32.s32 %v411
    %v415 = vcvt.f32.s32 %v413
    %v416 = vshll.u32 %v415, 16
    %v417 = vadd.s32 %v416, %v414
    %v418 = vadd.s32 %v92, %v93
    %v419 = vand.u32 %v418, 65535
    %v420 = vshrl.u32 %v418, 16
    %v421 = vcvt.s32.f32 %v419
    %v422 = vcvt.s32.f32 %v420
    %423 = vadd.xlane.f32.xlu0 %v421
    %v424 = vpop.xlane.xlu0 %423
    %425 = vadd.xlane.f32.xlu0 %v422
    %v426 = vpop.xlane.xlu0 %425
    %v427 = vcvt.f32.s32 %v424
    %v428 = vcvt.f32.s32 %v426
    %v429 = vshll.u32 %v428, 16
    %v430 = vadd.s32 %v429, %v427
    %v431 = vadd.s32 %v94, %v95
    %v432 = vand.u32 %v431, 65535
    %v433 = vshrl.u32 %v431, 16
    %v434 = vcvt.s32.f32 %v432
    %v435 = vcvt.s32.f32 %v433
    %436 = vadd.xlane.f32.xlu0 %v434
    %v437 = vpop.xlane.xlu0 %436
    %438 = vadd.xlane.f32.xlu0 %v435
    %v439 = vpop.xlane.xlu0 %438
    %v440 = vcvt.f32.s32 %v437
    %v441 = vcvt.f32.s32 %v439
    %v442 = vshll.u32 %v441, 16
    %v443 = vadd.s32 %v442, %v440
    %v444 = vadd.s32 %v96, %v97
    %v445 = vand.u32 %v444, 65535
    %v446 = vshrl.u32 %v444, 16
    %v447 = vcvt.s32.f32 %v445
    %v448 = vcvt.s32.f32 %v446
    %449 = vadd.xlane.f32.xlu0 %v447
    %v450 = vpop.xlane.xlu0 %449
    %451 = vadd.xlane.f32.xlu0 %v448
    %v452 = vpop.xlane.xlu0 %451
    %v453 = vcvt.f32.s32 %v450
    %v454 = vcvt.f32.s32 %v452
    %v455 = vshll.u32 %v454, 16
    %v456 = vadd.s32 %v455, %v453
    %v457 = vadd.s32 %v98, %v99
    %v458 = vand.u32 %v457, 65535
    %v459 = vshrl.u32 %v457, 16
    %v460 = vcvt.s32.f32 %v458
    %v461 = vcvt.s32.f32 %v459
    %462 = vadd.xlane.f32.xlu0 %v460
    %v463 = vpop.xlane.xlu0 %462
    %464 = vadd.xlane.f32.xlu0 %v461
    %v465 = vpop.xlane.xlu0 %464
    %v466 = vcvt.f32.s32 %v463
    %v467 = vcvt.f32.s32 %v465
    %v468 = vshll.u32 %v467, 16
    %v469 = vadd.s32 %v468, %v466
    %v470 = vadd.s32 %v100, %v101
    %v471 = vand.u32 %v470, 65535
    %v472 = vshrl.u32 %v470, 16
    %v473 = vcvt.s32.f32 %v471
    %v474 = vcvt.s32.f32 %v472
    %475 = vadd.xlane.f32.xlu0 %v473
    %v476 = vpop.xlane.xlu0 %475
    %477 = vadd.xlane.f32.xlu0 %v474
    %v478 = vpop.xlane.xlu0 %477
    %v479 = vcvt.f32.s32 %v476
    %v480 = vcvt.f32.s32 %v478
    %v481 = vshll.u32 %v480, 16
    %v482 = vadd.s32 %v481, %v479
    %v483 = vadd.s32 %v102, %v103
    %v484 = vand.u32 %v483, 65535
    %v485 = vshrl.u32 %v483, 16
    %v486 = vcvt.s32.f32 %v484
    %v487 = vcvt.s32.f32 %v485
    %488 = vadd.xlane.f32.xlu0 %v486
    %v489 = vpop.xlane.xlu0 %488
    %490 = vadd.xlane.f32.xlu0 %v487
    %v491 = vpop.xlane.xlu0 %490
    %v492 = vcvt.f32.s32 %v489
    %v493 = vcvt.f32.s32 %v491
    %v494 = vshll.u32 %v493, 16
    %v495 = vadd.s32 %v494, %v492
    %v496 = vadd.s32 %v104, %v105
    %v497 = vand.u32 %v496, 65535
    %v498 = vshrl.u32 %v496, 16
    %v499 = vcvt.s32.f32 %v497
    %v500 = vcvt.s32.f32 %v498
    %501 = vadd.xlane.f32.xlu0 %v499
    %v502 = vpop.xlane.xlu0 %501
    %503 = vadd.xlane.f32.xlu0 %v500
    %v504 = vpop.xlane.xlu0 %503
    %v505 = vcvt.f32.s32 %v502
    %v506 = vcvt.f32.s32 %v504
    %v507 = vshll.u32 %v506, 16
    %v508 = vadd.s32 %v507, %v505
    %v509 = vadd.s32 %v106, %v107
    %v510 = vand.u32 %v509, 65535
    %v511 = vshrl.u32 %v509, 16
    %v512 = vcvt.s32.f32 %v510
    %v513 = vcvt.s32.f32 %v511
    %514 = vadd.xlane.f32.xlu0 %v512
    %v515 = vpop.xlane.xlu0 %514
    %516 = vadd.xlane.f32.xlu0 %v513
    %v517 = vpop.xlane.xlu0 %516
    %v518 = vcvt.f32.s32 %v515
    %v519 = vcvt.f32.s32 %v517
    %v520 = vshll.u32 %v519, 16
    %v521 = vadd.s32 %v520, %v518
    %v522 = vadd.s32 %v108, %v109
    %v523 = vand.u32 %v522, 65535
    %v524 = vshrl.u32 %v522, 16
    %v525 = vcvt.s32.f32 %v523
    %v526 = vcvt.s32.f32 %v524
    %527 = vadd.xlane.f32.xlu0 %v525
    %v528 = vpop.xlane.xlu0 %527
    %529 = vadd.xlane.f32.xlu0 %v526
    %v530 = vpop.xlane.xlu0 %529
    %v531 = vcvt.f32.s32 %v528
    %v532 = vcvt.f32.s32 %v530
    %v533 = vshll.u32 %v532, 16
    %v534 = vadd.s32 %v533, %v531
    %v535 = vadd.s32 %v110, %v111
    %v536 = vand.u32 %v535, 65535
    %v537 = vshrl.u32 %v535, 16
    %v538 = vcvt.s32.f32 %v536
    %v539 = vcvt.s32.f32 %v537
    %540 = vadd.xlane.f32.xlu0 %v538
    %v541 = vpop.xlane.xlu0 %540
    %542 = vadd.xlane.f32.xlu0 %v539
    %v543 = vpop.xlane.xlu0 %542
    %v544 = vcvt.f32.s32 %v541
    %v545 = vcvt.f32.s32 %v543
    %v546 = vshll.u32 %v545, 16
    %v547 = vadd.s32 %v546, %v544
    %v548 = vadd.s32 %v112, %v113
    %v549 = vand.u32 %v548, 65535
    %v550 = vshrl.u32 %v548, 16
    %v551 = vcvt.s32.f32 %v549
    %v552 = vcvt.s32.f32 %v550
    %553 = vadd.xlane.f32.xlu0 %v551
    %v554 = vpop.xlane.xlu0 %553
    %555 = vadd.xlane.f32.xlu0 %v552
    %v556 = vpop.xlane.xlu0 %555
    %v557 = vcvt.f32.s32 %v554
    %v558 = vcvt.f32.s32 %v556
    %v559 = vshll.u32 %v558, 16
    %v560 = vadd.s32 %v559, %v557
    %v561 = vadd.s32 %v114, %v115
    %v562 = vand.u32 %v561, 65535
    %v563 = vshrl.u32 %v561, 16
    %v564 = vcvt.s32.f32 %v562
    %v565 = vcvt.s32.f32 %v563
    %566 = vadd.xlane.f32.xlu0 %v564
    %v567 = vpop.xlane.xlu0 %566
    %568 = vadd.xlane.f32.xlu0 %v565
    %v569 = vpop.xlane.xlu0 %568
    %v570 = vcvt.f32.s32 %v567
    %v571 = vcvt.f32.s32 %v569
    %v572 = vshll.u32 %v571, 16
    %v573 = vadd.s32 %v572, %v570
    %v574 = vadd.s32 %v116, %v117
    %v575 = vand.u32 %v574, 65535
    %v576 = vshrl.u32 %v574, 16
    %v577 = vcvt.s32.f32 %v575
    %v578 = vcvt.s32.f32 %v576
    %579 = vadd.xlane.f32.xlu0 %v577
    %v580 = vpop.xlane.xlu0 %579
    %581 = vadd.xlane.f32.xlu0 %v578
    %v582 = vpop.xlane.xlu0 %581
    %v583 = vcvt.f32.s32 %v580
    %v584 = vcvt.f32.s32 %v582
    %v585 = vshll.u32 %v584, 16
    %v586 = vadd.s32 %v585, %v583
    %v587 = vadd.s32 %v118, %v119
    %v588 = vand.u32 %v587, 65535
    %v589 = vshrl.u32 %v587, 16
    %v590 = vcvt.s32.f32 %v588
    %v591 = vcvt.s32.f32 %v589
    %592 = vadd.xlane.f32.xlu0 %v590
    %v593 = vpop.xlane.xlu0 %592
    %594 = vadd.xlane.f32.xlu0 %v591
    %v595 = vpop.xlane.xlu0 %594
    %v596 = vcvt.f32.s32 %v593
    %v597 = vcvt.f32.s32 %v595
    %v598 = vshll.u32 %v597, 16
    %v599 = vadd.s32 %v598, %v596
    %v600 = vadd.s32 %v120, %v121
    %v601 = vand.u32 %v600, 65535
    %v602 = vshrl.u32 %v600, 16
    %v603 = vcvt.s32.f32 %v601
    %v604 = vcvt.s32.f32 %v602
    %605 = vadd.xlane.f32.xlu0 %v603
    %v606 = vpop.xlane.xlu0 %605
    %607 = vadd.xlane.f32.xlu0 %v604
    %v608 = vpop.xlane.xlu0 %607
    %v609 = vcvt.f32.s32 %v606
    %v610 = vcvt.f32.s32 %v608
    %v611 = vshll.u32 %v610, 16
    %v612 = vadd.s32 %v611, %v609
    %v613 = vadd.s32 %v122, %v123
    %v614 = vand.u32 %v613, 65535
    %v615 = vshrl.u32 %v613, 16
    %v616 = vcvt.s32.f32 %v614
    %v617 = vcvt.s32.f32 %v615
    %618 = vadd.xlane.f32.xlu0 %v616
    %v619 = vpop.xlane.xlu0 %618
    %620 = vadd.xlane.f32.xlu0 %v617
    %v621 = vpop.xlane.xlu0 %620
    %v622 = vcvt.f32.s32 %v619
    %v623 = vcvt.f32.s32 %v621
    %v624 = vshll.u32 %v623, 16
    %v625 = vadd.s32 %v624, %v622
    %v626 = vadd.s32 %v124, %v125
    %v627 = vand.u32 %v626, 65535
    %v628 = vshrl.u32 %v626, 16
    %v629 = vcvt.s32.f32 %v627
    %v630 = vcvt.s32.f32 %v628
    %631 = vadd.xlane.f32.xlu0 %v629
    %v632 = vpop.xlane.xlu0 %631
    %633 = vadd.xlane.f32.xlu0 %v630
    %v634 = vpop.xlane.xlu0 %633
    %v635 = vcvt.f32.s32 %v632
    %v636 = vcvt.f32.s32 %v634
    %v637 = vshll.u32 %v636, 16
    %v638 = vadd.s32 %v637, %v635
    %v639 = vadd.s32 %v126, %v127
    %v640 = vand.u32 %v639, 65535
    %v641 = vshrl.u32 %v639, 16
    %v642 = vcvt.s32.f32 %v640
    %v643 = vcvt.s32.f32 %v641
    %644 = vadd.xlane.f32.xlu0 %v642
    %v645 = vpop.xlane.xlu0 %644
    %646 = vadd.xlane.f32.xlu0 %v643
    %v647 = vpop.xlane.xlu0 %646
    %v648 = vcvt.f32.s32 %v645
    %v649 = vcvt.f32.s32 %v647
    %v650 = vshll.u32 %v649, 16
    %v651 = vadd.s32 %v650, %v648
    %v652 = vadd.s32 %v128, %v129
    %v653 = vand.u32 %v652, 65535
    %v654 = vshrl.u32 %v652, 16
    %v655 = vcvt.s32.f32 %v653
    %v656 = vcvt.s32.f32 %v654
    %657 = vadd.xlane.f32.xlu0 %v655
    %v658 = vpop.xlane.xlu0 %657
    %659 = vadd.xlane.f32.xlu0 %v656
    %v660 = vpop.xlane.xlu0 %659
    %v661 = vcvt.f32.s32 %v658
    %v662 = vcvt.f32.s32 %v660
    %v663 = vshll.u32 %v662, 16
    %v664 = vadd.s32 %v663, %v661
    %v665 = vadd.s32 %v130, %v131
    %v666 = vand.u32 %v665, 65535
    %v667 = vshrl.u32 %v665, 16
    %v668 = vcvt.s32.f32 %v666
    %v669 = vcvt.s32.f32 %v667
    %670 = vadd.xlane.f32.xlu0 %v668
    %v671 = vpop.xlane.xlu0 %670
    %672 = vadd.xlane.f32.xlu0 %v669
    %v673 = vpop.xlane.xlu0 %672
    %v674 = vcvt.f32.s32 %v671
    %v675 = vcvt.f32.s32 %v673
    %v676 = vshll.u32 %v675, 16
    %v677 = vadd.s32 %v676, %v674
    %v678 = vadd.s32 %v132, %v133
    %v679 = vand.u32 %v678, 65535
    %v680 = vshrl.u32 %v678, 16
    %v681 = vcvt.s32.f32 %v679
    %v682 = vcvt.s32.f32 %v680
    %683 = vadd.xlane.f32.xlu0 %v681
    %v684 = vpop.xlane.xlu0 %683
    %685 = vadd.xlane.f32.xlu0 %v682
    %v686 = vpop.xlane.xlu0 %685
    %v687 = vcvt.f32.s32 %v684
    %v688 = vcvt.f32.s32 %v686
    %v689 = vshll.u32 %v688, 16
    %v690 = vadd.s32 %v689, %v687
    %v691 = vadd.s32 %v134, %v135
    %v692 = vand.u32 %v691, 65535
    %v693 = vshrl.u32 %v691, 16
    %v694 = vcvt.s32.f32 %v692
    %v695 = vcvt.s32.f32 %v693
    %696 = vadd.xlane.f32.xlu0 %v694
    %v697 = vpop.xlane.xlu0 %696
    %698 = vadd.xlane.f32.xlu0 %v695
    %v699 = vpop.xlane.xlu0 %698
    %v700 = vcvt.f32.s32 %v697
    %v701 = vcvt.f32.s32 %v699
    %v702 = vshll.u32 %v701, 16
    %v703 = vadd.s32 %v702, %v700
    %v704 = vadd.s32 %v136, %v137
    %v705 = vand.u32 %v704, 65535
    %v706 = vshrl.u32 %v704, 16
    %v707 = vcvt.s32.f32 %v705
    %v708 = vcvt.s32.f32 %v706
    %709 = vadd.xlane.f32.xlu0 %v707
    %v710 = vpop.xlane.xlu0 %709
    %711 = vadd.xlane.f32.xlu0 %v708
    %v712 = vpop.xlane.xlu0 %711
    %v713 = vcvt.f32.s32 %v710
    %v714 = vcvt.f32.s32 %v712
    %v715 = vshll.u32 %v714, 16
    %v716 = vadd.s32 %v715, %v713
    %v717 = vadd.s32 %v138, %v139
    %v718 = vand.u32 %v717, 65535
    %v719 = vshrl.u32 %v717, 16
    %v720 = vcvt.s32.f32 %v718
    %v721 = vcvt.s32.f32 %v719
    %722 = vadd.xlane.f32.xlu0 %v720
    %v723 = vpop.xlane.xlu0 %722
    %724 = vadd.xlane.f32.xlu0 %v721
    %v725 = vpop.xlane.xlu0 %724
    %v726 = vcvt.f32.s32 %v723
    %v727 = vcvt.f32.s32 %v725
    %v728 = vshll.u32 %v727, 16
    %v729 = vadd.s32 %v728, %v726
    %v730 = vadd.s32 %v140, %v141
    %v731 = vand.u32 %v730, 65535
    %v732 = vshrl.u32 %v730, 16
    %v733 = vcvt.s32.f32 %v731
    %v734 = vcvt.s32.f32 %v732
    %735 = vadd.xlane.f32.xlu0 %v733
    %v736 = vpop.xlane.xlu0 %735
    %737 = vadd.xlane.f32.xlu0 %v734
    %v738 = vpop.xlane.xlu0 %737
    %v739 = vcvt.f32.s32 %v736
    %v740 = vcvt.f32.s32 %v738
    %v741 = vshll.u32 %v740, 16
    %v742 = vadd.s32 %v741, %v739
    %v743 = vadd.s32 %v142, %v143
    %v744 = vand.u32 %v743, 65535
    %v745 = vshrl.u32 %v743, 16
    %v746 = vcvt.s32.f32 %v744
    %v747 = vcvt.s32.f32 %v745
    %748 = vadd.xlane.f32.xlu0 %v746
    %v749 = vpop.xlane.xlu0 %748
    %750 = vadd.xlane.f32.xlu0 %v747
    %v751 = vpop.xlane.xlu0 %750
    %v752 = vcvt.f32.s32 %v749
    %v753 = vcvt.f32.s32 %v751
    %v754 = vshll.u32 %v753, 16
    %v755 = vadd.s32 %v754, %v752
    %v756 = vadd.s32 %v144, %v145
    %v757 = vand.u32 %v756, 65535
    %v758 = vshrl.u32 %v756, 16
    %v759 = vcvt.s32.f32 %v757
    %v760 = vcvt.s32.f32 %v758
    %761 = vadd.xlane.f32.xlu0 %v759
    %v762 = vpop.xlane.xlu0 %761
    %763 = vadd.xlane.f32.xlu0 %v760
    %v764 = vpop.xlane.xlu0 %763
    %v765 = vcvt.f32.s32 %v762
    %v766 = vcvt.f32.s32 %v764
    %v767 = vshll.u32 %v766, 16
    %v768 = vadd.s32 %v767, %v765
    %v769 = vadd.s32 %v146, %v147
    %v770 = vand.u32 %v769, 65535
    %v771 = vshrl.u32 %v769, 16
    %v772 = vcvt.s32.f32 %v770
    %v773 = vcvt.s32.f32 %v771
    %774 = vadd.xlane.f32.xlu0 %v772
    %v775 = vpop.xlane.xlu0 %774
    %776 = vadd.xlane.f32.xlu0 %v773
    %v777 = vpop.xlane.xlu0 %776
    %v778 = vcvt.f32.s32 %v775
    %v779 = vcvt.f32.s32 %v777
    %v780 = vshll.u32 %v779, 16
    %v781 = vadd.s32 %v780, %v778
    %v782 = vadd.s32 %v148, %v149
    %v783 = vand.u32 %v782, 65535
    %v784 = vshrl.u32 %v782, 16
    %v785 = vcvt.s32.f32 %v783
    %v786 = vcvt.s32.f32 %v784
    %787 = vadd.xlane.f32.xlu0 %v785
    %v788 = vpop.xlane.xlu0 %787
    %789 = vadd.xlane.f32.xlu0 %v786
    %v790 = vpop.xlane.xlu0 %789
    %v791 = vcvt.f32.s32 %v788
    %v792 = vcvt.f32.s32 %v790
    %v793 = vshll.u32 %v792, 16
    %v794 = vadd.s32 %v793, %v791
    %v795 = vadd.s32 %v150, %v151
    %v796 = vand.u32 %v795, 65535
    %v797 = vshrl.u32 %v795, 16
    %v798 = vcvt.s32.f32 %v796
    %v799 = vcvt.s32.f32 %v797
    %800 = vadd.xlane.f32.xlu0 %v798
    %v801 = vpop.xlane.xlu0 %800
    %802 = vadd.xlane.f32.xlu0 %v799
    %v803 = vpop.xlane.xlu0 %802
    %v804 = vcvt.f32.s32 %v801
    %v805 = vcvt.f32.s32 %v803
    %v806 = vshll.u32 %v805, 16
    %v807 = vadd.s32 %v806, %v804
    %v808 = vadd.s32 %v152, %v153
    %v809 = vand.u32 %v808, 65535
    %v810 = vshrl.u32 %v808, 16
    %v811 = vcvt.s32.f32 %v809
    %v812 = vcvt.s32.f32 %v810
    %813 = vadd.xlane.f32.xlu0 %v811
    %v814 = vpop.xlane.xlu0 %813
    %815 = vadd.xlane.f32.xlu0 %v812
    %v816 = vpop.xlane.xlu0 %815
    %v817 = vcvt.f32.s32 %v814
    %v818 = vcvt.f32.s32 %v816
    %v819 = vshll.u32 %v818, 16
    %v820 = vadd.s32 %v819, %v817
    %v821 = vadd.s32 %v154, %v155
    %v822 = vand.u32 %v821, 65535
    %v823 = vshrl.u32 %v821, 16
    %v824 = vcvt.s32.f32 %v822
    %v825 = vcvt.s32.f32 %v823
    %826 = vadd.xlane.f32.xlu0 %v824
    %v827 = vpop.xlane.xlu0 %826
    %828 = vadd.xlane.f32.xlu0 %v825
    %v829 = vpop.xlane.xlu0 %828
    %v830 = vcvt.f32.s32 %v827
    %v831 = vcvt.f32.s32 %v829
    %v832 = vshll.u32 %v831, 16
    %v833 = vadd.s32 %v832, %v830
    %v834 = vadd.s32 %v156, %v157
    %v835 = vand.u32 %v834, 65535
    %v836 = vshrl.u32 %v834, 16
    %v837 = vcvt.s32.f32 %v835
    %v838 = vcvt.s32.f32 %v836
    %839 = vadd.xlane.f32.xlu0 %v837
    %v840 = vpop.xlane.xlu0 %839
    %841 = vadd.xlane.f32.xlu0 %v838
    %v842 = vpop.xlane.xlu0 %841
    %v843 = vcvt.f32.s32 %v840
    %v844 = vcvt.f32.s32 %v842
    %v845 = vshll.u32 %v844, 16
    %v846 = vadd.s32 %v845, %v843
    %v847 = vadd.s32 %v158, %v159
    %v848 = vand.u32 %v847, 65535
    %v849 = vshrl.u32 %v847, 16
    %v850 = vcvt.s32.f32 %v848
    %v851 = vcvt.s32.f32 %v849
    %852 = vadd.xlane.f32.xlu0 %v850
    %v853 = vpop.xlane.xlu0 %852
    %854 = vadd.xlane.f32.xlu0 %v851
    %v855 = vpop.xlane.xlu0 %854
    %v856 = vcvt.f32.s32 %v853
    %v857 = vcvt.f32.s32 %v855
    %v858 = vshll.u32 %v857, 16
    %v859 = vadd.s32 %v858, %v856
    %v860 = vadd.s32 %v160, %v161
    %v861 = vand.u32 %v860, 65535
    %v862 = vshrl.u32 %v860, 16
    %v863 = vcvt.s32.f32 %v861
    %v864 = vcvt.s32.f32 %v862
    %865 = vadd.xlane.f32.xlu0 %v863
    %v866 = vpop.xlane.xlu0 %865
    %867 = vadd.xlane.f32.xlu0 %v864
    %v868 = vpop.xlane.xlu0 %867
    %v869 = vcvt.f32.s32 %v866
    %v870 = vcvt.f32.s32 %v868
    %v871 = vshll.u32 %v870, 16
    %v872 = vadd.s32 %v871, %v869
    %v873 = vadd.s32 %v162, %v163
    %v874 = vand.u32 %v873, 65535
    %v875 = vshrl.u32 %v873, 16
    %v876 = vcvt.s32.f32 %v874
    %v877 = vcvt.s32.f32 %v875
    %878 = vadd.xlane.f32.xlu0 %v876
    %v879 = vpop.xlane.xlu0 %878
    %880 = vadd.xlane.f32.xlu0 %v877
    %v881 = vpop.xlane.xlu0 %880
    %v882 = vcvt.f32.s32 %v879
    %v883 = vcvt.f32.s32 %v881
    %v884 = vshll.u32 %v883, 16
    %v885 = vadd.s32 %v884, %v882
    %v886 = vadd.s32 %v164, %v165
    %v887 = vand.u32 %v886, 65535
    %v888 = vshrl.u32 %v886, 16
    %v889 = vcvt.s32.f32 %v887
    %v890 = vcvt.s32.f32 %v888
    %891 = vadd.xlane.f32.xlu0 %v889
    %v892 = vpop.xlane.xlu0 %891
    %893 = vadd.xlane.f32.xlu0 %v890
    %v894 = vpop.xlane.xlu0 %893
    %v895 = vcvt.f32.s32 %v892
    %v896 = vcvt.f32.s32 %v894
    %v897 = vshll.u32 %v896, 16
    %v898 = vadd.s32 %v897, %v895
    %v899 = vadd.s32 %v166, %v167
    %v900 = vand.u32 %v899, 65535
    %v901 = vshrl.u32 %v899, 16
    %v902 = vcvt.s32.f32 %v900
    %v903 = vcvt.s32.f32 %v901
    %904 = vadd.xlane.f32.xlu0 %v902
    %v905 = vpop.xlane.xlu0 %904
    %906 = vadd.xlane.f32.xlu0 %v903
    %v907 = vpop.xlane.xlu0 %906
    %v908 = vcvt.f32.s32 %v905
    %v909 = vcvt.f32.s32 %v907
    %v910 = vshll.u32 %v909, 16
    %v911 = vadd.s32 %v910, %v908
    %v912 = vadd.s32 %v168, %v169
    %v913 = vand.u32 %v912, 65535
    %v914 = vshrl.u32 %v912, 16
    %v915 = vcvt.s32.f32 %v913
    %v916 = vcvt.s32.f32 %v914
    %917 = vadd.xlane.f32.xlu0 %v915
    %v918 = vpop.xlane.xlu0 %917
    %919 = vadd.xlane.f32.xlu0 %v916
    %v920 = vpop.xlane.xlu0 %919
    %v921 = vcvt.f32.s32 %v918
    %v922 = vcvt.f32.s32 %v920
    %v923 = vshll.u32 %v922, 16
    %v924 = vadd.s32 %v923, %v921
    %v925 = vadd.s32 %v170, %v171
    %v926 = vand.u32 %v925, 65535
    %v927 = vshrl.u32 %v925, 16
    %v928 = vcvt.s32.f32 %v926
    %v929 = vcvt.s32.f32 %v927
    %930 = vadd.xlane.f32.xlu0 %v928
    %v931 = vpop.xlane.xlu0 %930
    %932 = vadd.xlane.f32.xlu0 %v929
    %v933 = vpop.xlane.xlu0 %932
    %v934 = vcvt.f32.s32 %v931
    %v935 = vcvt.f32.s32 %v933
    %v936 = vshll.u32 %v935, 16
    %v937 = vadd.s32 %v936, %v934
    %v938 = vadd.s32 %v172, %v173
    %v939 = vand.u32 %v938, 65535
    %v940 = vshrl.u32 %v938, 16
    %v941 = vcvt.s32.f32 %v939
    %v942 = vcvt.s32.f32 %v940
    %943 = vadd.xlane.f32.xlu0 %v941
    %v944 = vpop.xlane.xlu0 %943
    %945 = vadd.xlane.f32.xlu0 %v942
    %v946 = vpop.xlane.xlu0 %945
    %v947 = vcvt.f32.s32 %v944
    %v948 = vcvt.f32.s32 %v946
    %v949 = vshll.u32 %v948, 16
    %v950 = vadd.s32 %v949, %v947
    %v951 = vadd.s32 %v174, %v175
    %v952 = vand.u32 %v951, 65535
    %v953 = vshrl.u32 %v951, 16
    %v954 = vcvt.s32.f32 %v952
    %v955 = vcvt.s32.f32 %v953
    %956 = vadd.xlane.f32.xlu0 %v954
    %v957 = vpop.xlane.xlu0 %956
    %958 = vadd.xlane.f32.xlu0 %v955
    %v959 = vpop.xlane.xlu0 %958
    %v960 = vcvt.f32.s32 %v957
    %v961 = vcvt.f32.s32 %v959
    %v962 = vshll.u32 %v961, 16
    %v963 = vadd.s32 %v962, %v960
    %v964 = vadd.s32 %v176, %v177
    %v965 = vand.u32 %v964, 65535
    %v966 = vshrl.u32 %v964, 16
    %v967 = vcvt.s32.f32 %v965
    %v968 = vcvt.s32.f32 %v966
    %969 = vadd.xlane.f32.xlu0 %v967
    %v970 = vpop.xlane.xlu0 %969
    %971 = vadd.xlane.f32.xlu0 %v968
    %v972 = vpop.xlane.xlu0 %971
    %v973 = vcvt.f32.s32 %v970
    %v974 = vcvt.f32.s32 %v972
    %v975 = vshll.u32 %v974, 16
    %v976 = vadd.s32 %v975, %v973
    %v977 = vadd.s32 %v178, %v179
    %v978 = vand.u32 %v977, 65535
    %v979 = vshrl.u32 %v977, 16
    %v980 = vcvt.s32.f32 %v978
    %v981 = vcvt.s32.f32 %v979
    %982 = vadd.xlane.f32.xlu0 %v980
    %v983 = vpop.xlane.xlu0 %982
    %984 = vadd.xlane.f32.xlu0 %v981
    %v985 = vpop.xlane.xlu0 %984
    %v986 = vcvt.f32.s32 %v983
    %v987 = vcvt.f32.s32 %v985
    %v988 = vshll.u32 %v987, 16
    %v989 = vadd.s32 %v988, %v986
    %v990 = vadd.s32 %v180, %v181
    %v991 = vand.u32 %v990, 65535
    %v992 = vshrl.u32 %v990, 16
    %v993 = vcvt.s32.f32 %v991
    %v994 = vcvt.s32.f32 %v992
    %995 = vadd.xlane.f32.xlu0 %v993
    %v996 = vpop.xlane.xlu0 %995
    %997 = vadd.xlane.f32.xlu0 %v994
    %v998 = vpop.xlane.xlu0 %997
    %v999 = vcvt.f32.s32 %v996
    %v1000 = vcvt.f32.s32 %v998
    %v1001 = vshll.u32 %v1000, 16
    %v1002 = vadd.s32 %v1001, %v999
    %v1003 = vadd.s32 %v182, %v183
    %v1004 = vand.u32 %v1003, 65535
    %v1005 = vshrl.u32 %v1003, 16
    %v1006 = vcvt.s32.f32 %v1004
    %v1007 = vcvt.s32.f32 %v1005
    %1008 = vadd.xlane.f32.xlu0 %v1006
    %v1009 = vpop.xlane.xlu0 %1008
    %1010 = vadd.xlane.f32.xlu0 %v1007
    %v1011 = vpop.xlane.xlu0 %1010
    %v1012 = vcvt.f32.s32 %v1009
    %v1013 = vcvt.f32.s32 %v1011
    %v1014 = vshll.u32 %v1013, 16
    %v1015 = vadd.s32 %v1014, %v1012
    %v1016 = vsub.s32 256, %v196
    %v1017 = vsub.s32 256, %v209
    %v1018 = vsub.s32 256, %v222
    %v1019 = vsub.s32 256, %v235
    %v1020 = vsub.s32 256, %v248
    %v1021 = vsub.s32 256, %v261
    %v1022 = vsub.s32 256, %v274
    %v1023 = vsub.s32 256, %v287
    %v1024 = vsub.s32 256, %v300
    %v1025 = vsub.s32 256, %v313
    %v1026 = vsub.s32 256, %v326
    %v1027 = vsub.s32 256, %v339
    %v1028 = vsub.s32 256, %v352
    %v1029 = vsub.s32 256, %v365
    %v1030 = vsub.s32 256, %v378
    %v1031 = vsub.s32 256, %v391
    %v1032 = vsub.s32 256, %v404
    %v1033 = vsub.s32 256, %v417
    %v1034 = vsub.s32 256, %v430
    %v1035 = vsub.s32 256, %v443
    %v1036 = vsub.s32 256, %v456
    %v1037 = vsub.s32 256, %v469
    %v1038 = vsub.s32 256, %v482
    %v1039 = vsub.s32 256, %v495
    %v1040 = vsub.s32 256, %v508
    %v1041 = vsub.s32 256, %v521
    %v1042 = vsub.s32 256, %v534
    %v1043 = vsub.s32 256, %v547
    %v1044 = vsub.s32 256, %v560
    %v1045 = vsub.s32 256, %v573
    %v1046 = vsub.s32 256, %v586
    %v1047 = vsub.s32 256, %v599
    %v1048 = vsub.s32 256, %v612
    %v1049 = vsub.s32 256, %v625
    %v1050 = vsub.s32 256, %v638
    %v1051 = vsub.s32 256, %v651
    %v1052 = vsub.s32 256, %v664
    %v1053 = vsub.s32 256, %v677
    %v1054 = vsub.s32 256, %v690
    %v1055 = vsub.s32 256, %v703
    %v1056 = vsub.s32 256, %v716
    %v1057 = vsub.s32 256, %v729
    %v1058 = vsub.s32 256, %v742
    %v1059 = vsub.s32 256, %v755
    %v1060 = vsub.s32 256, %v768
    %v1061 = vsub.s32 256, %v781
    %v1062 = vsub.s32 256, %v794
    %v1063 = vsub.s32 256, %v807
    %v1064 = vsub.s32 256, %v820
    %v1065 = vsub.s32 256, %v833
    %v1066 = vsub.s32 256, %v846
    %v1067 = vsub.s32 256, %v859
    %v1068 = vsub.s32 256, %v872
    %v1069 = vsub.s32 256, %v885
    %v1070 = vsub.s32 256, %v898
    %v1071 = vsub.s32 256, %v911
    %v1072 = vsub.s32 256, %v924
    %v1073 = vsub.s32 256, %v937
    %v1074 = vsub.s32 256, %v950
    %v1075 = vsub.s32 256, %v963
    %v1076 = vsub.s32 256, %v976
    %v1077 = vsub.s32 256, %v989
    %v1078 = vsub.s32 256, %v1002
    %v1079 = vsub.s32 256, %v1015
    %v1080 = vcvt.s32.f32 %v1016
    %v1081 = vcvt.s32.f32 %v1017
    %v1082 = vcvt.s32.f32 %v1018
    %v1083 = vcvt.s32.f32 %v1019
    %v1084 = vcvt.s32.f32 %v1020
    %v1085 = vcvt.s32.f32 %v1021
    %v1086 = vcvt.s32.f32 %v1022
    %v1087 = vcvt.s32.f32 %v1023
    %v1088 = vcvt.s32.f32 %v1024
    %v1089 = vcvt.s32.f32 %v1025
    %v1090 = vcvt.s32.f32 %v1026
    %v1091 = vcvt.s32.f32 %v1027
    %v1092 = vcvt.s32.f32 %v1028
    %v1093 = vcvt.s32.f32 %v1029
    %v1094 = vcvt.s32.f32 %v1030
    %v1095 = vcvt.s32.f32 %v1031
    %v1096 = vcvt.s32.f32 %v1032
    %v1097 = vcvt.s32.f32 %v1033
    %v1098 = vcvt.s32.f32 %v1034
    %v1099 = vcvt.s32.f32 %v1035
    %v1100 = vcvt.s32.f32 %v1036
    %v1101 = vcvt.s32.f32 %v1037
    %v1102 = vcvt.s32.f32 %v1038
    %v1103 = vcvt.s32.f32 %v1039
    %v1104 = vcvt.s32.f32 %v1040
    %v1105 = vcvt.s32.f32 %v1041
    %v1106 = vcvt.s32.f32 %v1042
    %v1107 = vcvt.s32.f32 %v1043
    %v1108 = vcvt.s32.f32 %v1044
    %v1109 = vcvt.s32.f32 %v1045
    %v1110 = vcvt.s32.f32 %v1046
    %v1111 = vcvt.s32.f32 %v1047
    %v1112 = vcvt.s32.f32 %v1048
    %v1113 = vcvt.s32.f32 %v1049
    %v1114 = vcvt.s32.f32 %v1050
    %v1115 = vcvt.s32.f32 %v1051
    %v1116 = vcvt.s32.f32 %v1052
    %v1117 = vcvt.s32.f32 %v1053
    %v1118 = vcvt.s32.f32 %v1054
    %v1119 = vcvt.s32.f32 %v1055
    %v1120 = vcvt.s32.f32 %v1056
    %v1121 = vcvt.s32.f32 %v1057
    %v1122 = vcvt.s32.f32 %v1058
    %v1123 = vcvt.s32.f32 %v1059
    %v1124 = vcvt.s32.f32 %v1060
    %v1125 = vcvt.s32.f32 %v1061
    %v1126 = vcvt.s32.f32 %v1062
    %v1127 = vcvt.s32.f32 %v1063
    %v1128 = vcvt.s32.f32 %v1064
    %v1129 = vcvt.s32.f32 %v1065
    %v1130 = vcvt.s32.f32 %v1066
    %v1131 = vcvt.s32.f32 %v1067
    %v1132 = vcvt.s32.f32 %v1068
    %v1133 = vcvt.s32.f32 %v1069
    %v1134 = vcvt.s32.f32 %v1070
    %v1135 = vcvt.s32.f32 %v1071
    %v1136 = vcvt.s32.f32 %v1072
    %v1137 = vcvt.s32.f32 %v1073
    %v1138 = vcvt.s32.f32 %v1074
    %v1139 = vcvt.s32.f32 %v1075
    %v1140 = vcvt.s32.f32 %v1076
    %v1141 = vcvt.s32.f32 %v1077
    %v1142 = vcvt.s32.f32 %v1078
    %v1143 = vcvt.s32.f32 %v1079
    %v1144 = vmul.f32 %v1080, 0.7
    %v1145 = vmul.f32 %v1081, 0.7
    %v1146 = vmul.f32 %v1082, 0.7
    %v1147 = vmul.f32 %v1083, 0.7
    %v1148 = vmul.f32 %v1084, 0.7
    %v1149 = vmul.f32 %v1085, 0.7
    %v1150 = vmul.f32 %v1086, 0.7
    %v1151 = vmul.f32 %v1087, 0.7
    %v1152 = vmul.f32 %v1088, 0.7
    %v1153 = vmul.f32 %v1089, 0.7
    %v1154 = vmul.f32 %v1090, 0.7
    %v1155 = vmul.f32 %v1091, 0.7
    %v1156 = vmul.f32 %v1092, 0.7
    %v1157 = vmul.f32 %v1093, 0.7
    %v1158 = vmul.f32 %v1094, 0.7
    %v1159 = vmul.f32 %v1095, 0.7
    %v1160 = vmul.f32 %v1096, 0.7
    %v1161 = vmul.f32 %v1097, 0.7
    %v1162 = vmul.f32 %v1098, 0.7
    %v1163 = vmul.f32 %v1099, 0.7
    %v1164 = vmul.f32 %v1100, 0.7
    %v1165 = vmul.f32 %v1101, 0.7
    %v1166 = vmul.f32 %v1102, 0.7
    %v1167 = vmul.f32 %v1103, 0.7
    %v1168 = vmul.f32 %v1104, 0.7
    %v1169 = vmul.f32 %v1105, 0.7
    %v1170 = vmul.f32 %v1106, 0.7
    %v1171 = vmul.f32 %v1107, 0.7
    %v1172 = vmul.f32 %v1108, 0.7
    %v1173 = vmul.f32 %v1109, 0.7
    %v1174 = vmul.f32 %v1110, 0.7
    %v1175 = vmul.f32 %v1111, 0.7
    %v1176 = vmul.f32 %v1112, 0.7
    %v1177 = vmul.f32 %v1113, 0.7
    %v1178 = vmul.f32 %v1114, 0.7
    %v1179 = vmul.f32 %v1115, 0.7
    %v1180 = vmul.f32 %v1116, 0.7
    %v1181 = vmul.f32 %v1117, 0.7
    %v1182 = vmul.f32 %v1118, 0.7
    %v1183 = vmul.f32 %v1119, 0.7
    %v1184 = vmul.f32 %v1120, 0.7
    %v1185 = vmul.f32 %v1121, 0.7
    %v1186 = vmul.f32 %v1122, 0.7
    %v1187 = vmul.f32 %v1123, 0.7
    %v1188 = vmul.f32 %v1124, 0.7
    %v1189 = vmul.f32 %v1125, 0.7
    %v1190 = vmul.f32 %v1126, 0.7
    %v1191 = vmul.f32 %v1127, 0.7
    %v1192 = vmul.f32 %v1128, 0.7
    %v1193 = vmul.f32 %v1129, 0.7
    %v1194 = vmul.f32 %v1130, 0.7
    %v1195 = vmul.f32 %v1131, 0.7
    %v1196 = vmul.f32 %v1132, 0.7
    %v1197 = vmul.f32 %v1133, 0.7
    %v1198 = vmul.f32 %v1134, 0.7
    %v1199 = vmul.f32 %v1135, 0.7
    %v1200 = vmul.f32 %v1136, 0.7
    %v1201 = vmul.f32 %v1137, 0.7
    %v1202 = vmul.f32 %v1138, 0.7
    %v1203 = vmul.f32 %v1139, 0.7
    %v1204 = vmul.f32 %v1140, 0.7
    %v1205 = vmul.f32 %v1141, 0.7
    %v1206 = vmul.f32 %v1142, 0.7
    %v1207 = vmul.f32 %v1143, 0.7
    %v1208 = vceil.f32 %v1144
    %v1209 = vceil.f32 %v1145
    %v1210 = vceil.f32 %v1146
    %v1211 = vceil.f32 %v1147
    %v1212 = vceil.f32 %v1148
    %v1213 = vceil.f32 %v1149
    %v1214 = vceil.f32 %v1150
    %v1215 = vceil.f32 %v1151
    %v1216 = vceil.f32 %v1152
    %v1217 = vceil.f32 %v1153
    %v1218 = vceil.f32 %v1154
    %v1219 = vceil.f32 %v1155
    %v1220 = vceil.f32 %v1156
    %v1221 = vceil.f32 %v1157
    %v1222 = vceil.f32 %v1158
    %v1223 = vceil.f32 %v1159
    %v1224 = vceil.f32 %v1160
    %v1225 = vceil.f32 %v1161
    %v1226 = vceil.f32 %v1162
    %v1227 = vceil.f32 %v1163
    %v1228 = vceil.f32 %v1164
    %v1229 = vceil.f32 %v1165
    %v1230 = vceil.f32 %v1166
    %v1231 = vceil.f32 %v1167
    %v1232 = vceil.f32 %v1168
    %v1233 = vceil.f32 %v1169
    %v1234 = vceil.f32 %v1170
    %v1235 = vceil.f32 %v1171
    %v1236 = vceil.f32 %v1172
    %v1237 = vceil.f32 %v1173
    %v1238 = vceil.f32 %v1174
    %v1239 = vceil.f32 %v1175
    %v1240 = vceil.f32 %v1176
    %v1241 = vceil.f32 %v1177
    %v1242 = vceil.f32 %v1178
    %v1243 = vceil.f32 %v1179
    %v1244 = vceil.f32 %v1180
    %v1245 = vceil.f32 %v1181
    %v1246 = vceil.f32 %v1182
    %v1247 = vceil.f32 %v1183
    %v1248 = vceil.f32 %v1184
    %v1249 = vceil.f32 %v1185
    %v1250 = vceil.f32 %v1186
    %v1251 = vceil.f32 %v1187
    %v1252 = vceil.f32 %v1188
    %v1253 = vceil.f32 %v1189
    %v1254 = vceil.f32 %v1190
    %v1255 = vceil.f32 %v1191
    %v1256 = vceil.f32 %v1192
    %v1257 = vceil.f32 %v1193
    %v1258 = vceil.f32 %v1194
    %v1259 = vceil.f32 %v1195
    %v1260 = vceil.f32 %v1196
    %v1261 = vceil.f32 %v1197
    %v1262 = vceil.f32 %v1198
    %v1263 = vceil.f32 %v1199
    %v1264 = vceil.f32 %v1200
    %v1265 = vceil.f32 %v1201
    %v1266 = vceil.f32 %v1202
    %v1267 = vceil.f32 %v1203
    %v1268 = vceil.f32 %v1204
    %v1269 = vceil.f32 %v1205
    %v1270 = vceil.f32 %v1206
    %v1271 = vceil.f32 %v1207
    %v1272 = vcvt.f32.s32.to.zero.pseudo %v1208
    %v1273 = vcvt.f32.s32.to.zero.pseudo %v1209
    %v1274 = vcvt.f32.s32.to.zero.pseudo %v1210
    %v1275 = vcvt.f32.s32.to.zero.pseudo %v1211
    %v1276 = vcvt.f32.s32.to.zero.pseudo %v1212
    %v1277 = vcvt.f32.s32.to.zero.pseudo %v1213
    %v1278 = vcvt.f32.s32.to.zero.pseudo %v1214
    %v1279 = vcvt.f32.s32.to.zero.pseudo %v1215
    %v1280 = vcvt.f32.s32.to.zero.pseudo %v1216
    %v1281 = vcvt.f32.s32.to.zero.pseudo %v1217
    %v1282 = vcvt.f32.s32.to.zero.pseudo %v1218
    %v1283 = vcvt.f32.s32.to.zero.pseudo %v1219
    %v1284 = vcvt.f32.s32.to.zero.pseudo %v1220
    %v1285 = vcvt.f32.s32.to.zero.pseudo %v1221
    %v1286 = vcvt.f32.s32.to.zero.pseudo %v1222
    %v1287 = vcvt.f32.s32.to.zero.pseudo %v1223
    %v1288 = vcvt.f32.s32.to.zero.pseudo %v1224
    %v1289 = vcvt.f32.s32.to.zero.pseudo %v1225
    %v1290 = vcvt.f32.s32.to.zero.pseudo %v1226
    %v1291 = vcvt.f32.s32.to.zero.pseudo %v1227
    %v1292 = vcvt.f32.s32.to.zero.pseudo %v1228
    %v1293 = vcvt.f32.s32.to.zero.pseudo %v1229
    %v1294 = vcvt.f32.s32.to.zero.pseudo %v1230
    %v1295 = vcvt.f32.s32.to.zero.pseudo %v1231
    %v1296 = vcvt.f32.s32.to.zero.pseudo %v1232
    %v1297 = vcvt.f32.s32.to.zero.pseudo %v1233
    %v1298 = vcvt.f32.s32.to.zero.pseudo %v1234
    %v1299 = vcvt.f32.s32.to.zero.pseudo %v1235
    %v1300 = vcvt.f32.s32.to.zero.pseudo %v1236
    %v1301 = vcvt.f32.s32.to.zero.pseudo %v1237
    %v1302 = vcvt.f32.s32.to.zero.pseudo %v1238
    %v1303 = vcvt.f32.s32.to.zero.pseudo %v1239
    %v1304 = vcvt.f32.s32.to.zero.pseudo %v1240
    %v1305 = vcvt.f32.s32.to.zero.pseudo %v1241
    %v1306 = vcvt.f32.s32.to.zero.pseudo %v1242
    %v1307 = vcvt.f32.s32.to.zero.pseudo %v1243
    %v1308 = vcvt.f32.s32.to.zero.pseudo %v1244
    %v1309 = vcvt.f32.s32.to.zero.pseudo %v1245
    %v1310 = vcvt.f32.s32.to.zero.pseudo %v1246
    %v1311 = vcvt.f32.s32.to.zero.pseudo %v1247
    %v1312 = vcvt.f32.s32.to.zero.pseudo %v1248
    %v1313 = vcvt.f32.s32.to.zero.pseudo %v1249
    %v1314 = vcvt.f32.s32.to.zero.pseudo %v1250
    %v1315 = vcvt.f32.s32.to.zero.pseudo %v1251
    %v1316 = vcvt.f32.s32.to.zero.pseudo %v1252
    %v1317 = vcvt.f32.s32.to.zero.pseudo %v1253
    %v1318 = vcvt.f32.s32.to.zero.pseudo %v1254
    %v1319 = vcvt.f32.s32.to.zero.pseudo %v1255
    %v1320 = vcvt.f32.s32.to.zero.pseudo %v1256
    %v1321 = vcvt.f32.s32.to.zero.pseudo %v1257
    %v1322 = vcvt.f32.s32.to.zero.pseudo %v1258
    %v1323 = vcvt.f32.s32.to.zero.pseudo %v1259
    %v1324 = vcvt.f32.s32.to.zero.pseudo %v1260
    %v1325 = vcvt.f32.s32.to.zero.pseudo %v1261
    %v1326 = vcvt.f32.s32.to.zero.pseudo %v1262
    %v1327 = vcvt.f32.s32.to.zero.pseudo %v1263
    %v1328 = vcvt.f32.s32.to.zero.pseudo %v1264
    %v1329 = vcvt.f32.s32.to.zero.pseudo %v1265
    %v1330 = vcvt.f32.s32.to.zero.pseudo %v1266
    %v1331 = vcvt.f32.s32.to.zero.pseudo %v1267
    %v1332 = vcvt.f32.s32.to.zero.pseudo %v1268
    %v1333 = vcvt.f32.s32.to.zero.pseudo %v1269
    %v1334 = vcvt.f32.s32.to.zero.pseudo %v1270
    %v1335 = vcvt.f32.s32.to.zero.pseudo %v1271
    %vm1336 = vcmp.lt.s32.totalorder %v1272, 255
    %v1337 = vsel %vm1336, %v1272, 255
    %vm1338 = vcmp.lt.s32.totalorder %v1273, 255
    %v1339 = vsel %vm1338, %v1273, 255
    %vm1340 = vcmp.lt.s32.totalorder %v1274, 255
    %v1341 = vsel %vm1340, %v1274, 255
    %vm1342 = vcmp.lt.s32.totalorder %v1275, 255
    %v1343 = vsel %vm1342, %v1275, 255
    %vm1344 = vcmp.lt.s32.totalorder %v1276, 255
    %v1345 = vsel %vm1344, %v1276, 255
    %vm1346 = vcmp.lt.s32.totalorder %v1277, 255
    %v1347 = vsel %vm1346, %v1277, 255
    %vm1348 = vcmp.lt.s32.totalorder %v1278, 255
    %v1349 = vsel %vm1348, %v1278, 255
    %vm1350 = vcmp.lt.s32.totalorder %v1279, 255
    %v1351 = vsel %vm1350, %v1279, 255
    %vm1352 = vcmp.lt.s32.totalorder %v1280, 255
    %v1353 = vsel %vm1352, %v1280, 255
    %vm1354 = vcmp.lt.s32.totalorder %v1281, 255
    %v1355 = vsel %vm1354, %v1281, 255
    %vm1356 = vcmp.lt.s32.totalorder %v1282, 255
    %v1357 = vsel %vm1356, %v1282, 255
    %vm1358 = vcmp.lt.s32.totalorder %v1283, 255
    %v1359 = vsel %vm1358, %v1283, 255
    %vm1360 = vcmp.lt.s32.totalorder %v1284, 255
    %v1361 = vsel %vm1360, %v1284, 255
    %vm1362 = vcmp.lt.s32.totalorder %v1285, 255
    %v1363 = vsel %vm1362, %v1285, 255
    %vm1364 = vcmp.lt.s32.totalorder %v1286, 255
    %v1365 = vsel %vm1364, %v1286, 255
    %vm1366 = vcmp.lt.s32.totalorder %v1287, 255
    %v1367 = vsel %vm1366, %v1287, 255
    %vm1368 = vcmp.lt.s32.totalorder %v1288, 255
    %v1369 = vsel %vm1368, %v1288, 255
    %vm1370 = vcmp.lt.s32.totalorder %v1289, 255
    %v1371 = vsel %vm1370, %v1289, 255
    %vm1372 = vcmp.lt.s32.totalorder %v1290, 255
    %v1373 = vsel %vm1372, %v1290, 255
    %vm1374 = vcmp.lt.s32.totalorder %v1291, 255
    %v1375 = vsel %vm1374, %v1291, 255
    %vm1376 = vcmp.lt.s32.totalorder %v1292, 255
    %v1377 = vsel %vm1376, %v1292, 255
    %vm1378 = vcmp.lt.s32.totalorder %v1293, 255
    %v1379 = vsel %vm1378, %v1293, 255
    %vm1380 = vcmp.lt.s32.totalorder %v1294, 255
    %v1381 = vsel %vm1380, %v1294, 255
    %vm1382 = vcmp.lt.s32.totalorder %v1295, 255
    %v1383 = vsel %vm1382, %v1295, 255
    %vm1384 = vcmp.lt.s32.totalorder %v1296, 255
    %v1385 = vsel %vm1384, %v1296, 255
    %vm1386 = vcmp.lt.s32.totalorder %v1297, 255
    %v1387 = vsel %vm1386, %v1297, 255
    %vm1388 = vcmp.lt.s32.totalorder %v1298, 255
    %v1389 = vsel %vm1388, %v1298, 255
    %vm1390 = vcmp.lt.s32.totalorder %v1299, 255
    %v1391 = vsel %vm1390, %v1299, 255
    %vm1392 = vcmp.lt.s32.totalorder %v1300, 255
    %v1393 = vsel %vm1392, %v1300, 255
    %vm1394 = vcmp.lt.s32.totalorder %v1301, 255
    %v1395 = vsel %vm1394, %v1301, 255
    %vm1396 = vcmp.lt.s32.totalorder %v1302, 255
    %v1397 = vsel %vm1396, %v1302, 255
    %vm1398 = vcmp.lt.s32.totalorder %v1303, 255
    %v1399 = vsel %vm1398, %v1303, 255
    %vm1400 = vcmp.lt.s32.totalorder %v1304, 255
    %v1401 = vsel %vm1400, %v1304, 255
    %vm1402 = vcmp.lt.s32.totalorder %v1305, 255
    %v1403 = vsel %vm1402, %v1305, 255
    %vm1404 = vcmp.lt.s32.totalorder %v1306, 255
    %v1405 = vsel %vm1404, %v1306, 255
    %vm1406 = vcmp.lt.s32.totalorder %v1307, 255
    %v1407 = vsel %vm1406, %v1307, 255
    %vm1408 = vcmp.lt.s32.totalorder %v1308, 255
    %v1409 = vsel %vm1408, %v1308, 255
    %vm1410 = vcmp.lt.s32.totalorder %v1309, 255
    %v1411 = vsel %vm1410, %v1309, 255
    %vm1412 = vcmp.lt.s32.totalorder %v1310, 255
    %v1413 = vsel %vm1412, %v1310, 255
    %vm1414 = vcmp.lt.s32.totalorder %v1311, 255
    %v1415 = vsel %vm1414, %v1311, 255
    %vm1416 = vcmp.lt.s32.totalorder %v1312, 255
    %v1417 = vsel %vm1416, %v1312, 255
    %vm1418 = vcmp.lt.s32.totalorder %v1313, 255
    %v1419 = vsel %vm1418, %v1313, 255
    %vm1420 = vcmp.lt.s32.totalorder %v1314, 255
    %v1421 = vsel %vm1420, %v1314, 255
    %vm1422 = vcmp.lt.s32.totalorder %v1315, 255
    %v1423 = vsel %vm1422, %v1315, 255
    %vm1424 = vcmp.lt.s32.totalorder %v1316, 255
    %v1425 = vsel %vm1424, %v1316, 255
    %vm1426 = vcmp.lt.s32.totalorder %v1317, 255
    %v1427 = vsel %vm1426, %v1317, 255
    %vm1428 = vcmp.lt.s32.totalorder %v1318, 255
    %v1429 = vsel %vm1428, %v1318, 255
    %vm1430 = vcmp.lt.s32.totalorder %v1319, 255
    %v1431 = vsel %vm1430, %v1319, 255
    %vm1432 = vcmp.lt.s32.totalorder %v1320, 255
    %v1433 = vsel %vm1432, %v1320, 255
    %vm1434 = vcmp.lt.s32.totalorder %v1321, 255
    %v1435 = vsel %vm1434, %v1321, 255
    %vm1436 = vcmp.lt.s32.totalorder %v1322, 255
    %v1437 = vsel %vm1436, %v1322, 255
    %vm1438 = vcmp.lt.s32.totalorder %v1323, 255
    %v1439 = vsel %vm1438, %v1323, 255
    %vm1440 = vcmp.lt.s32.totalorder %v1324, 255
    %v1441 = vsel %vm1440, %v1324, 255
    %vm1442 = vcmp.lt.s32.totalorder %v1325, 255
    %v1443 = vsel %vm1442, %v1325, 255
    %vm1444 = vcmp.lt.s32.totalorder %v1326, 255
    %v1445 = vsel %vm1444, %v1326, 255
    %vm1446 = vcmp.lt.s32.totalorder %v1327, 255
    %v1447 = vsel %vm1446, %v1327, 255
    %vm1448 = vcmp.lt.s32.totalorder %v1328, 255
    %v1449 = vsel %vm1448, %v1328, 255
    %vm1450 = vcmp.lt.s32.totalorder %v1329, 255
    %v1451 = vsel %vm1450, %v1329, 255
    %vm1452 = vcmp.lt.s32.totalorder %v1330, 255
    %v1453 = vsel %vm1452, %v1330, 255
    %vm1454 = vcmp.lt.s32.totalorder %v1331, 255
    %v1455 = vsel %vm1454, %v1331, 255
    %vm1456 = vcmp.lt.s32.totalorder %v1332, 255
    %v1457 = vsel %vm1456, %v1332, 255
    %vm1458 = vcmp.lt.s32.totalorder %v1333, 255
    %v1459 = vsel %vm1458, %v1333, 255
    %vm1460 = vcmp.lt.s32.totalorder %v1334, 255
    %v1461 = vsel %vm1460, %v1334, 255
    %vm1462 = vcmp.lt.s32.totalorder %v1335, 255
    %v1463 = vsel %vm1462, %v1335, 255
    %v1464 = vlaneseq
    %v1465 = vand.u32 %v1464, 127
    %v1466 = vadd.s32 %v1465, 128
    %vm1467 = vcmp.ge.s32.totalorder %v1465, %v1337
    %vm1468 = vcmp.ge.s32.totalorder %v1466, %v1337
    %vm1469 = vcmp.ge.s32.totalorder %v1465, %v1339
    %vm1470 = vcmp.ge.s32.totalorder %v1466, %v1339
    %vm1471 = vcmp.ge.s32.totalorder %v1465, %v1341
    %vm1472 = vcmp.ge.s32.totalorder %v1466, %v1341
    %vm1473 = vcmp.ge.s32.totalorder %v1465, %v1343
    %vm1474 = vcmp.ge.s32.totalorder %v1466, %v1343
    %vm1475 = vcmp.ge.s32.totalorder %v1465, %v1345
    %vm1476 = vcmp.ge.s32.totalorder %v1466, %v1345
    %vm1477 = vcmp.ge.s32.totalorder %v1465, %v1347
    %vm1478 = vcmp.ge.s32.totalorder %v1466, %v1347
    %vm1479 = vcmp.ge.s32.totalorder %v1465, %v1349
    %vm1480 = vcmp.ge.s32.totalorder %v1466, %v1349
    %vm1481 = vcmp.ge.s32.totalorder %v1465, %v1351
    %vm1482 = vcmp.ge.s32.totalorder %v1466, %v1351
    %vm1483 = vcmp.ge.s32.totalorder %v1465, %v1353
    %vm1484 = vcmp.ge.s32.totalorder %v1466, %v1353
    %vm1485 = vcmp.ge.s32.totalorder %v1465, %v1355
    %vm1486 = vcmp.ge.s32.totalorder %v1466, %v1355
    %vm1487 = vcmp.ge.s32.totalorder %v1465, %v1357
    %vm1488 = vcmp.ge.s32.totalorder %v1466, %v1357
    %vm1489 = vcmp.ge.s32.totalorder %v1465, %v1359
    %vm1490 = vcmp.ge.s32.totalorder %v1466, %v1359
    %vm1491 = vcmp.ge.s32.totalorder %v1465, %v1361
    %vm1492 = vcmp.ge.s32.totalorder %v1466, %v1361
    %vm1493 = vcmp.ge.s32.totalorder %v1465, %v1363
    %vm1494 = vcmp.ge.s32.totalorder %v1466, %v1363
    %vm1495 = vcmp.ge.s32.totalorder %v1465, %v1365
    %vm1496 = vcmp.ge.s32.totalorder %v1466, %v1365
    %vm1497 = vcmp.ge.s32.totalorder %v1465, %v1367
    %vm1498 = vcmp.ge.s32.totalorder %v1466, %v1367
    %vm1499 = vcmp.ge.s32.totalorder %v1465, %v1369
    %vm1500 = vcmp.ge.s32.totalorder %v1466, %v1369
    %vm1501 = vcmp.ge.s32.totalorder %v1465, %v1371
    %vm1502 = vcmp.ge.s32.totalorder %v1466, %v1371
    %vm1503 = vcmp.ge.s32.totalorder %v1465, %v1373
    %vm1504 = vcmp.ge.s32.totalorder %v1466, %v1373
    %vm1505 = vcmp.ge.s32.totalorder %v1465, %v1375
    %vm1506 = vcmp.ge.s32.totalorder %v1466, %v1375
    %vm1507 = vcmp.ge.s32.totalorder %v1465, %v1377
    %vm1508 = vcmp.ge.s32.totalorder %v1466, %v1377
    %vm1509 = vcmp.ge.s32.totalorder %v1465, %v1379
    %vm1510 = vcmp.ge.s32.totalorder %v1466, %v1379
    %vm1511 = vcmp.ge.s32.totalorder %v1465, %v1381
    %vm1512 = vcmp.ge.s32.totalorder %v1466, %v1381
    %vm1513 = vcmp.ge.s32.totalorder %v1465, %v1383
    %vm1514 = vcmp.ge.s32.totalorder %v1466, %v1383
    %vm1515 = vcmp.ge.s32.totalorder %v1465, %v1385
    %vm1516 = vcmp.ge.s32.totalorder %v1466, %v1385
    %vm1517 = vcmp.ge.s32.totalorder %v1465, %v1387
    %vm1518 = vcmp.ge.s32.totalorder %v1466, %v1387
    %vm1519 = vcmp.ge.s32.totalorder %v1465, %v1389
    %vm1520 = vcmp.ge.s32.totalorder %v1466, %v1389
    %vm1521 = vcmp.ge.s32.totalorder %v1465, %v1391
    %vm1522 = vcmp.ge.s32.totalorder %v1466, %v1391
    %vm1523 = vcmp.ge.s32.totalorder %v1465, %v1393
    %vm1524 = vcmp.ge.s32.totalorder %v1466, %v1393
    %vm1525 = vcmp.ge.s32.totalorder %v1465, %v1395
    %vm1526 = vcmp.ge.s32.totalorder %v1466, %v1395
    %vm1527 = vcmp.ge.s32.totalorder %v1465, %v1397
    %vm1528 = vcmp.ge.s32.totalorder %v1466, %v1397
    %vm1529 = vcmp.ge.s32.totalorder %v1465, %v1399
    %vm1530 = vcmp.ge.s32.totalorder %v1466, %v1399
    %vm1531 = vcmp.ge.s32.totalorder %v1465, %v1401
    %vm1532 = vcmp.ge.s32.totalorder %v1466, %v1401
    %vm1533 = vcmp.ge.s32.totalorder %v1465, %v1403
    %vm1534 = vcmp.ge.s32.totalorder %v1466, %v1403
    %vm1535 = vcmp.ge.s32.totalorder %v1465, %v1405
    %vm1536 = vcmp.ge.s32.totalorder %v1466, %v1405
    %vm1537 = vcmp.ge.s32.totalorder %v1465, %v1407
    %vm1538 = vcmp.ge.s32.totalorder %v1466, %v1407
    %vm1539 = vcmp.ge.s32.totalorder %v1465, %v1409
    %vm1540 = vcmp.ge.s32.totalorder %v1466, %v1409
    %vm1541 = vcmp.ge.s32.totalorder %v1465, %v1411
    %vm1542 = vcmp.ge.s32.totalorder %v1466, %v1411
    %vm1543 = vcmp.ge.s32.totalorder %v1465, %v1413
    %vm1544 = vcmp.ge.s32.totalorder %v1466, %v1413
    %vm1545 = vcmp.ge.s32.totalorder %v1465, %v1415
    %vm1546 = vcmp.ge.s32.totalorder %v1466, %v1415
    %vm1547 = vcmp.ge.s32.totalorder %v1465, %v1417
    %vm1548 = vcmp.ge.s32.totalorder %v1466, %v1417
    %vm1549 = vcmp.ge.s32.totalorder %v1465, %v1419
    %vm1550 = vcmp.ge.s32.totalorder %v1466, %v1419
    %vm1551 = vcmp.ge.s32.totalorder %v1465, %v1421
    %vm1552 = vcmp.ge.s32.totalorder %v1466, %v1421
    %vm1553 = vcmp.ge.s32.totalorder %v1465, %v1423
    %vm1554 = vcmp.ge.s32.totalorder %v1466, %v1423
    %vm1555 = vcmp.ge.s32.totalorder %v1465, %v1425
    %vm1556 = vcmp.ge.s32.totalorder %v1466, %v1425
    %vm1557 = vcmp.ge.s32.totalorder %v1465, %v1427
    %vm1558 = vcmp.ge.s32.totalorder %v1466, %v1427
    %vm1559 = vcmp.ge.s32.totalorder %v1465, %v1429
    %vm1560 = vcmp.ge.s32.totalorder %v1466, %v1429
    %vm1561 = vcmp.ge.s32.totalorder %v1465, %v1431
    %vm1562 = vcmp.ge.s32.totalorder %v1466, %v1431
    %vm1563 = vcmp.ge.s32.totalorder %v1465, %v1433
    %vm1564 = vcmp.ge.s32.totalorder %v1466, %v1433
    %vm1565 = vcmp.ge.s32.totalorder %v1465, %v1435
    %vm1566 = vcmp.ge.s32.totalorder %v1466, %v1435
    %vm1567 = vcmp.ge.s32.totalorder %v1465, %v1437
    %vm1568 = vcmp.ge.s32.totalorder %v1466, %v1437
    %vm1569 = vcmp.ge.s32.totalorder %v1465, %v1439
    %vm1570 = vcmp.ge.s32.totalorder %v1466, %v1439
    %vm1571 = vcmp.ge.s32.totalorder %v1465, %v1441
    %vm1572 = vcmp.ge.s32.totalorder %v1466, %v1441
    %vm1573 = vcmp.ge.s32.totalorder %v1465, %v1443
    %vm1574 = vcmp.ge.s32.totalorder %v1466, %v1443
    %vm1575 = vcmp.ge.s32.totalorder %v1465, %v1445
    %vm1576 = vcmp.ge.s32.totalorder %v1466, %v1445
    %vm1577 = vcmp.ge.s32.totalorder %v1465, %v1447
    %vm1578 = vcmp.ge.s32.totalorder %v1466, %v1447
    %vm1579 = vcmp.ge.s32.totalorder %v1465, %v1449
    %vm1580 = vcmp.ge.s32.totalorder %v1466, %v1449
    %vm1581 = vcmp.ge.s32.totalorder %v1465, %v1451
    %vm1582 = vcmp.ge.s32.totalorder %v1466, %v1451
    %vm1583 = vcmp.ge.s32.totalorder %v1465, %v1453
    %vm1584 = vcmp.ge.s32.totalorder %v1466, %v1453
    %vm1585 = vcmp.ge.s32.totalorder %v1465, %v1455
    %vm1586 = vcmp.ge.s32.totalorder %v1466, %v1455
    %vm1587 = vcmp.ge.s32.totalorder %v1465, %v1457
    %vm1588 = vcmp.ge.s32.totalorder %v1466, %v1457
    %vm1589 = vcmp.ge.s32.totalorder %v1465, %v1459
    %vm1590 = vcmp.ge.s32.totalorder %v1466, %v1459
    %vm1591 = vcmp.ge.s32.totalorder %v1465, %v1461
    %vm1592 = vcmp.ge.s32.totalorder %v1466, %v1461
    %vm1593 = vcmp.ge.s32.totalorder %v1465, %v1463
    %vm1594 = vcmp.ge.s32.totalorder %v1466, %v1463
    %vm1595 = vmpackc.low %vm1469, %vm1467
    %vm1596 = vmpackc.low %vm1473, %vm1471
    %vm1597 = vmpackc.even %vm1596, %vm1595
    %vm1598 = vmpackc.low %vm1470, %vm1468
    %vm1599 = vmpackc.low %vm1474, %vm1472
    %vm1600 = vmpackc.even %vm1599, %vm1598
    %vm1601 = vmpackc.low %vm1477, %vm1475
    %vm1602 = vmpackc.low %vm1481, %vm1479
    %vm1603 = vmpackc.even %vm1602, %vm1601
    %vm1604 = vmpackc.low %vm1478, %vm1476
    %vm1605 = vmpackc.low %vm1482, %vm1480
    %vm1606 = vmpackc.even %vm1605, %vm1604
    %vm1607 = vmpackc.low %vm1485, %vm1483
    %vm1608 = vmpackc.low %vm1489, %vm1487
    %vm1609 = vmpackc.even %vm1608, %vm1607
    %vm1610 = vmpackc.low %vm1486, %vm1484
    %vm1611 = vmpackc.low %vm1490, %vm1488
    %vm1612 = vmpackc.even %vm1611, %vm1610
    %vm1613 = vmpackc.low %vm1493, %vm1491
    %vm1614 = vmpackc.low %vm1497, %vm1495
    %vm1615 = vmpackc.even %vm1614, %vm1613
    %vm1616 = vmpackc.low %vm1494, %vm1492
    %vm1617 = vmpackc.low %vm1498, %vm1496
    %vm1618 = vmpackc.even %vm1617, %vm1616
    %vm1619 = vmpackc.low %vm1501, %vm1499
    %vm1620 = vmpackc.low %vm1505, %vm1503
    %vm1621 = vmpackc.even %vm1620, %vm1619
    %vm1622 = vmpackc.low %vm1502, %vm1500
    %vm1623 = vmpackc.low %vm1506, %vm1504
    %vm1624 = vmpackc.even %vm1623, %vm1622
    %vm1625 = vmpackc.low %vm1509, %vm1507
    %vm1626 = vmpackc.low %vm1513, %vm1511
    %vm1627 = vmpackc.even %vm1626, %vm1625
    %vm1628 = vmpackc.low %vm1510, %vm1508
    %vm1629 = vmpackc.low %vm1514, %vm1512
    %vm1630 = vmpackc.even %vm1629, %vm1628
    %vm1631 = vmpackc.low %vm1517, %vm1515
    %vm1632 = vmpackc.low %vm1521, %vm1519
    %vm1633 = vmpackc.even %vm1632, %vm1631
    %vm1634 = vmpackc.low %vm1518, %vm1516
    %vm1635 = vmpackc.low %vm1522, %vm1520
    %vm1636 = vmpackc.even %vm1635, %vm1634
    %vm1637 = vmpackc.low %vm1525, %vm1523
    %vm1638 = vmpackc.low %vm1529, %vm1527
    %vm1639 = vmpackc.even %vm1638, %vm1637
    %vm1640 = vmpackc.low %vm1526, %vm1524
    %vm1641 = vmpackc.low %vm1530, %vm1528
    %vm1642 = vmpackc.even %vm1641, %vm1640
    %vm1643 = vmpackc.low %vm1533, %vm1531
    %vm1644 = vmpackc.low %vm1537, %vm1535
    %vm1645 = vmpackc.even %vm1644, %vm1643
    %vm1646 = vmpackc.low %vm1534, %vm1532
    %vm1647 = vmpackc.low %vm1538, %vm1536
    %vm1648 = vmpackc.even %vm1647, %vm1646
    %vm1649 = vmpackc.low %vm1541, %vm1539
    %vm1650 = vmpackc.low %vm1545, %vm1543
    %vm1651 = vmpackc.even %vm1650, %vm1649
    %vm1652 = vmpackc.low %vm1542, %vm1540
    %vm1653 = vmpackc.low %vm1546, %vm1544
    %vm1654 = vmpackc.even %vm1653, %vm1652
    %vm1655 = vmpackc.low %vm1549, %vm1547
    %vm1656 = vmpackc.low %vm1553, %vm1551
    %vm1657 = vmpackc.even %vm1656, %vm1655
    %vm1658 = vmpackc.low %vm1550, %vm1548
    %vm1659 = vmpackc.low %vm1554, %vm1552
    %vm1660 = vmpackc.even %vm1659, %vm1658
    %vm1661 = vmpackc.low %vm1557, %vm1555
    %vm1662 = vmpackc.low %vm1561, %vm1559
    %vm1663 = vmpackc.even %vm1662, %vm1661
    %vm1664 = vmpackc.low %vm1558, %vm1556
    %vm1665 = vmpackc.low %vm1562, %vm1560
    %vm1666 = vmpackc.even %vm1665, %vm1664
    %vm1667 = vmpackc.low %vm1565, %vm1563
    %vm1668 = vmpackc.low %vm1569, %vm1567
    %vm1669 = vmpackc.even %vm1668, %vm1667
    %vm1670 = vmpackc.low %vm1566, %vm1564
    %vm1671 = vmpackc.low %vm1570, %vm1568
    %vm1672 = vmpackc.even %vm1671, %vm1670
    %vm1673 = vmpackc.low %vm1573, %vm1571
    %vm1674 = vmpackc.low %vm1577, %vm1575
    %vm1675 = vmpackc.even %vm1674, %vm1673
    %vm1676 = vmpackc.low %vm1574, %vm1572
    %vm1677 = vmpackc.low %vm1578, %vm1576
    %vm1678 = vmpackc.even %vm1677, %vm1676
    %vm1679 = vmpackc.low %vm1581, %vm1579
    %vm1680 = vmpackc.low %vm1585, %vm1583
    %vm1681 = vmpackc.even %vm1680, %vm1679
    %vm1682 = vmpackc.low %vm1582, %vm1580
    %vm1683 = vmpackc.low %vm1586, %vm1584
    %vm1684 = vmpackc.even %vm1683, %vm1682
    %vm1685 = vmpackc.low %vm1589, %vm1587
    %vm1686 = vmpackc.low %vm1593, %vm1591
    %vm1687 = vmpackc.even %vm1686, %vm1685
    %vm1688 = vmpackc.low %vm1590, %vm1588
    %vm1689 = vmpackc.low %vm1594, %vm1592
    %vm1690 = vmpackc.even %vm1689, %vm1688
    %v1691 = vsel %vm1597, 16843009, %v24
    %v1692 = vsel %vm1600, 16843009, %v25
    %v1693 = vsel %vm1603, 16843009, %v26
    %v1694 = vsel %vm1606, 16843009, %v27
    %v1695 = vsel %vm1609, 16843009, %v28
    %v1696 = vsel %vm1612, 16843009, %v29
    %v1697 = vsel %vm1615, 16843009, %v30
    %v1698 = vsel %vm1618, 16843009, %v31
    %v1699 = vsel %vm1621, 16843009, %v32
    %v1700 = vsel %vm1624, 16843009, %v33
    %v1701 = vsel %vm1627, 16843009, %v34
    %v1702 = vsel %vm1630, 16843009, %v35
    %v1703 = vsel %vm1633, 16843009, %v36
    %v1704 = vsel %vm1636, 16843009, %v37
    %v1705 = vsel %vm1639, 16843009, %v38
    %v1706 = vsel %vm1642, 16843009, %v39
    %v1707 = vsel %vm1645, 16843009, %v40
    %v1708 = vsel %vm1648, 16843009, %v41
    %v1709 = vsel %vm1651, 16843009, %v42
    %v1710 = vsel %vm1654, 16843009, %v43
    %v1711 = vsel %vm1657, 16843009, %v44
    %v1712 = vsel %vm1660, 16843009, %v45
    %v1713 = vsel %vm1663, 16843009, %v46
    %v1714 = vsel %vm1666, 16843009, %v47
    %v1715 = vsel %vm1669, 16843009, %v48
    %v1716 = vsel %vm1672, 16843009, %v49
    %v1717 = vsel %vm1675, 16843009, %v50
    %v1718 = vsel %vm1678, 16843009, %v51
    %v1719 = vsel %vm1681, 16843009, %v52
    %v1720 = vsel %vm1684, 16843009, %v53
    %v1721 = vsel %vm1687, 16843009, %v54
    %v1722 = vsel %vm1690, 16843009, %v55
    %1723 = vst [vmem:[#allocation5] sm:$0xff] %v1691
    %1724 = vst [vmem:[#allocation5 + $0x8] sm:$0xff] %v1692
    %1725 = vst [vmem:[#allocation5 + $0x10] sm:$0xff] %v1693
    %1726 = vst [vmem:[#allocation5 + $0x18] sm:$0xff] %v1694
    %1727 = vst [vmem:[#allocation5 + $0x20] sm:$0xff] %v1695
    %1728 = vst [vmem:[#allocation5 + $0x28] sm:$0xff] %v1696
    %1729 = vst [vmem:[#allocation5 + $0x30] sm:$0xff] %v1697
    %1730 = vst [vmem:[#allocation5 + $0x38] sm:$0xff] %v1698
    %1731 = vst [vmem:[#allocation5 + $0x40] sm:$0xff] %v1699
    %1732 = vst [vmem:[#allocation5 + $0x48] sm:$0xff] %v1700
    %1733 = vst [vmem:[#allocation5 + $0x50] sm:$0xff] %v1701
    %1734 = vst [vmem:[#allocation5 + $0x58] sm:$0xff] %v1702
    %1735 = vst [vmem:[#allocation5 + $0x60] sm:$0xff] %v1703
    %1736 = vst [vmem:[#allocation5 + $0x68] sm:$0xff] %v1704
    %1737 = vst [vmem:[#allocation5 + $0x70] sm:$0xff] %v1705
    %1738 = vst [vmem:[#allocation5 + $0x78] sm:$0xff] %v1706
    %1739 = vst [vmem:[#allocation5 + $0x80] sm:$0xff] %v1707
    %1740 = vst [vmem:[#allocation5 + $0x88] sm:$0xff] %v1708
    %1741 = vst [vmem:[#allocation5 + $0x90] sm:$0xff] %v1709
    %1742 = vst [vmem:[#allocation5 + $0x98] sm:$0xff] %v1710
    %1743 = vst [vmem:[#allocation5 + $0xa0] sm:$0xff] %v1711
    %1744 = vst [vmem:[#allocation5 + $0xa8] sm:$0xff] %v1712
    %1745 = vst [vmem:[#allocation5 + $0xb0] sm:$0xff] %v1713
    %1746 = vst [vmem:[#allocation5 + $0xb8] sm:$0xff] %v1714
    %1747 = vst [vmem:[#allocation5 + $0xc0] sm:$0xff] %v1715
    %1748 = vst [vmem:[#allocation5 + $0xc8] sm:$0xff] %v1716
    %1749 = vst [vmem:[#allocation5 + $0xd0] sm:$0xff] %v1717
    %1750 = vst [vmem:[#allocation5 + $0xd8] sm:$0xff] %v1718
    %1751 = vst [vmem:[#allocation5 + $0xe0] sm:$0xff] %v1719
    %1752 = vst [vmem:[#allocation5 + $0xe8] sm:$0xff] %v1720
    %1753 = vst [vmem:[#allocation5 + $0xf0] sm:$0xff] %v1721
    %1754 = vst [vmem:[#allocation5 + $0xf8] sm:$0xff] %v1722
    // Predicated region
    $region10: #{tpu_custom_call.1} parent=1 // pred_check
      _
    $region11: #{tpu_custom_call.1} parent=1 // pred_check_branch
      %1756 = sbr.rel (0) target = $region13
    $region12: #{tpu_custom_call.1} parent=1 // pred_region
      %s1758 = ssub.s32 4096, 4096
      %1759 = vsyncadd [#allocation4], %s1758
      %s1760 = sshll.u32 [#allocation5], 4
      %s1761 = int_to_ptr.vmem [resolvable:$true] %s1760
      %1766 = dma.vmem_to_hbm [thread:$0]  %s1761, 4096, %s1, [#allocation4], 256, 256, 16
    $region13: #{tpu_custom_call.1} parent=1 // pred_fallthru
      _
    // Predicated region
    $region14: #{tpu_custom_call.1} parent=1 // pred_check
      _
    $region15: #{tpu_custom_call.1} parent=1 // pred_check_branch
      %1768 = sbr.rel (0) target = $region17
    $region16: #{tpu_custom_call.1} parent=1 // pred_region
      %1769 = dma.done [#allocation4], 4096
    $region17: #{tpu_custom_call.1} parent=1 // pred_fallthru
      _
    %1770 = vsyncpa [#allocation3], 1
    %1771 = vsyncpa [#allocation4], 1

</llo_original>
